<compile_context>
chip_gen: v7x
topology: tpu7x:2x2x1
jax: 0.10.0
libtpu: 0.0.40
codegen_flags: <defaults>
</compile_context>

<pallas_src>
import jax
import jax.numpy as jnp
from jax.experimental import pallas as pl
from jax.experimental.pallas import tpu as pltpu

CONCAT_NUM = 5
FRAME_LEN = 25
INPUT_DIM = FRAME_LEN * CONCAT_NUM - 13  # 112
OUT_DIM = 13
OUT_PAD = 128  # last matmul computed at lane width on the MXU; sliced to 13 at store

# (in_dim, out_dim) for each nn.Linear in the PyTorch Sequential
LAYER_DIMS = [
    (INPUT_DIM, 128),
    (128, 128),
    (128, 128),
    (128, 64),
    (64, 32),
    (32, OUT_DIM),
]


def _round_up(x, m):
    return ((x + m - 1) // m) * m


def mlp_kernel(x_ref,
               w0_ref, b0_ref,
               w1_ref, b1_ref,
               w2_ref, b2_ref,
               w3_ref, b3_ref,
               w4_ref, b4_ref,
               w5_ref, b5_ref,
               o_ref):
    """Fused 6-layer MLP for one (TILE_B, 112) batch tile.

    bf16 operands on the MXU, f32 accumulation; bias-add / ReLU in f32 on the VPU.
    Layers 0..4 apply ReLU; layer 5 is linear (matches the PyTorch model).
    Only the valid 13 output columns are written back (narrow f32 store).
    """
    def layer(h_bf16, w_ref, b_ref, relu):
        acc = jnp.dot(h_bf16, w_ref[...], preferred_element_type=jnp.float32)
        acc = acc + b_ref[...]
        if relu:
            acc = jnp.maximum(acc, 0.0)
        return acc

    # x arrives as f32; cast to bf16 in-kernel (cheap on the VPU) rather than
    # paying a separate HBM cast pass in the wrapper.
    h = layer(x_ref[...].astype(jnp.bfloat16), w0_ref, b0_ref, True)
    h = layer(h.astype(jnp.bfloat16), w1_ref, b1_ref, True)
    h = layer(h.astype(jnp.bfloat16), w2_ref, b2_ref, True)
    h = layer(h.astype(jnp.bfloat16), w3_ref, b3_ref, True)
    h = layer(h.astype(jnp.bfloat16), w4_ref, b4_ref, True)
    out = layer(h.astype(jnp.bfloat16), w5_ref, b5_ref, False)   # (TILE_B, OUT_PAD) f32
    o_ref[...] = out[:, :OUT_DIM].astype(o_ref.dtype)             # store valid cols only


def init_params(key):
    """Deterministic init mimicking PyTorch nn.Linear default:
    W, b ~ U(-1/sqrt(fan_in), 1/sqrt(fan_in)).
    Weights stored as (in_dim, out_dim) (pre-transposed vs. PyTorch); biases (1, out_dim)."""
    params = []
    for (d_in, d_out) in LAYER_DIMS:
        key, kw, kb = jax.random.split(key, 3)
        bound = 1.0 / jnp.sqrt(jnp.float32(d_in))
        w = jax.random.uniform(kw, (d_in, d_out), jnp.float32, -bound, bound)
        b = jax.random.uniform(kb, (1, d_out), jnp.float32, -bound, bound)
        params.append((w, b))
    return params


def prep_kernel_params(params):
    """One-time prep (hoisted out of the forward path): cast weights to bf16,
    keep biases f32, zero-pad the last layer's columns 13 -> OUT_PAD so the final
    MXU matmul runs at full lane width (output is sliced back to 13 in-kernel)."""
    prepped = []
    n = len(params)
    for i, (w, b) in enumerate(params):
        if i == n - 1:
            w = jnp.pad(w, ((0, 0), (0, OUT_PAD - w.shape[1])))
            b = jnp.pad(b, ((0, 0), (0, OUT_PAD - b.shape[1])))
        prepped.append((w.astype(jnp.bfloat16), b.astype(jnp.float32)))
    return prepped


def _pick_tile_b(B):
    """Batch tile: multiple of 256; >= 2 tiles when padded batch >= 512 so the
    'parallel' grid axis can shard across v7x's two TensorCores; capped at 2048
    rows (VMEM per step stays only a few MiB — safe on all generations)."""
    b_ceil = _round_up(max(B, 1), 256)
    if b_ceil >= 512:
        return min(2048, _round_up(b_ceil // 2, 256))
    return b_ceil


def my_model_forward(x, kparams, tile_b=None):
    """x: (B, INPUT_DIM) float32; kparams from prep_kernel_params. Returns (B, 13) f32."""
    B = x.shape[0]
    if tile_b is None:
        tile_b = _pick_tile_b(B)
    b_pad = _round_up(max(B, 1), tile_b)
    grid = (b_pad // tile_b,)

    # Pad batch to a tile multiple; stays f32 (bf16 cast happens inside the kernel).
    x_pad = jnp.pad(x, ((0, b_pad - B), (0, 0)))

    flat_args = [x_pad]
    for (w, b) in kparams:
        flat_args.append(w)
        flat_args.append(b)

    in_specs = [pl.BlockSpec((tile_b, INPUT_DIM), lambda i: (i, 0))]
    for (w, b) in kparams:
        # Constant index_map: weights/biases DMA'd once and stay VMEM-resident.
        in_specs.append(pl.BlockSpec(w.shape, lambda i: (0, 0)))
        in_specs.append(pl.BlockSpec(b.shape, lambda i: (0, 0)))
    out_specs = pl.BlockSpec((tile_b, OUT_DIM), lambda i: (i, 0))

    # Advisory cost estimate (updated for f32 input read + narrow f32 output write).
    flops_per_row = 2 * sum(d_in * d_out for (d_in, d_out) in LAYER_DIMS)
    weight_bytes = sum(w.size * w.dtype.itemsize + b.size * b.dtype.itemsize
                       for (w, b) in kparams)
    bytes_accessed = (b_pad * INPUT_DIM * 4       # f32 input read
                      + b_pad * OUT_DIM * 4       # narrow f32 output write
                      + weight_bytes)

    out = pl.pallas_call(
        mlp_kernel,
        out_shape=jax.ShapeDtypeStruct((b_pad, OUT_DIM), jnp.float32),
        grid=grid,
        in_specs=in_specs,
        out_specs=out_specs,
        compiler_params=pltpu.CompilerParams(
            dimension_semantics=("parallel",),
            vmem_limit_bytes=32 * 1024 * 1024,
        ),
        cost_estimate=pl.CostEstimate(
            flops=flops_per_row * b_pad,
            transcendentals=0,
            bytes_accessed=bytes_accessed,
        ),
    )(*flat_args)

    return out[:B]


def reference_forward_f32(x, params):
    """Pure-JAX f32 reference (exact PyTorch semantics)."""
    h = x
    n = len(params)
    for i, (w, b) in enumerate(params):
        h = h @ w + b
        if i < n - 1:
            h = jnp.maximum(h, 0.0)
    return h


def reference_forward_bf16(x, params):
    """Pure-JAX reference using the same bf16-operand / f32-accumulate recipe as the kernel."""
    h = x.astype(jnp.bfloat16)
    n = len(params)
    for i, (w, b) in enumerate(params):
        h = jnp.dot(h, w.astype(jnp.bfloat16),
                    preferred_element_type=jnp.float32) + b
        if i < n - 1:
            h = jnp.maximum(h, 0.0)
            h = h.astype(jnp.bfloat16)
    return h


if __name__ == "__main__":
    key = jax.random.PRNGKey(0)
    key, kx, kx2 = jax.random.split(key, 3)

    params = init_params(jax.random.PRNGKey(42))
    kparams = prep_kernel_params(params)   # prep once; reused across calls

    forward = jax.jit(lambda xb: my_model_forward(xb, kparams))

    # Small test shape (pads up to one 256-row batch tile).
    batch = 64
    x = jax.random.normal(kx, (batch, INPUT_DIM), jnp.float32)
    out = jax.block_until_ready(forward(x))
    assert out.shape == (batch, OUT_DIM), out.shape

    # Tight check against the identical bf16-matmul / f32-accumulate recipe.
    ref_bf16 = reference_forward_bf16(x, params)
    assert jnp.allclose(out, ref_bf16, atol=1e-3, rtol=1e-3), (
        "mismatch vs bf16-recipe reference")

    # Loose check against the pure-f32 PyTorch-equivalent reference
    # (bf16 matmul operands introduce small, bounded error over 6 layers).
    ref_f32 = reference_forward_f32(x, params)
    assert jnp.allclose(out, ref_f32, atol=5e-2, rtol=5e-2), (
        "mismatch vs f32 reference")

    # Exercise the multi-tile path (>= 2 tiles -> shards across v7x's 2 TCs).
    batch2 = 600
    x2 = jax.random.normal(kx2, (batch2, INPUT_DIM), jnp.float32)
    forward2 = jax.jit(lambda xb: my_model_forward(xb, kparams))
    out2 = jax.block_until_ready(forward2(x2))
    assert out2.shape == (batch2, OUT_DIM), out2.shape
    ref2 = reference_forward_bf16(x2, params)
    assert jnp.allclose(out2, ref2, atol=1e-3, rtol=1e-3), (
        "multi-tile mismatch vs bf16-recipe reference")

    print("KERNEL_OK")
</pallas_src>

<mosaic_0001>
module attributes {stable_mosaic.version = 11 : i64} {
  func.func @mlp_kernel(%arg0: i32, %arg1: memref<256x112xf32, #tpu.memory_space<vmem>>, %arg2: memref<112x128xbf16, #tpu.memory_space<vmem>>, %arg3: memref<1x128xf32, #tpu.memory_space<vmem>>, %arg4: memref<128x128xbf16, #tpu.memory_space<vmem>>, %arg5: memref<1x128xf32, #tpu.memory_space<vmem>>, %arg6: memref<128x128xbf16, #tpu.memory_space<vmem>>, %arg7: memref<1x128xf32, #tpu.memory_space<vmem>>, %arg8: memref<128x64xbf16, #tpu.memory_space<vmem>>, %arg9: memref<1x64xf32, #tpu.memory_space<vmem>>, %arg10: memref<64x32xbf16, #tpu.memory_space<vmem>>, %arg11: memref<1x32xf32, #tpu.memory_space<vmem>>, %arg12: memref<32x128xbf16, #tpu.memory_space<vmem>>, %arg13: memref<1x128xf32, #tpu.memory_space<vmem>>, %arg14: memref<256x13xf32, #tpu.memory_space<vmem>>) attributes {dimension_semantics = [#tpu.dimension_semantics<parallel>], iteration_bounds = array<i64: 1>, scalar_prefetch = 0 : i64, scratch_operands = 0 : i64, tpu.core_type = #tpu.core_type<tc>, window_params = [{transform_indices = @transform_0, window_bounds = array<i64: 256, 112>}, {pipeline_mode = #tpu.pipeline_mode<synchronous>, transform_indices = @transform_1, window_bounds = array<i64: 112, 128>}, {pipeline_mode = #tpu.pipeline_mode<synchronous>, transform_indices = @transform_2, window_bounds = array<i64: 1, 128>}, {pipeline_mode = #tpu.pipeline_mode<synchronous>, transform_indices = @transform_3, window_bounds = array<i64: 128, 128>}, {pipeline_mode = #tpu.pipeline_mode<synchronous>, transform_indices = @transform_4, window_bounds = array<i64: 1, 128>}, {pipeline_mode = #tpu.pipeline_mode<synchronous>, transform_indices = @transform_5, window_bounds = array<i64: 128, 128>}, {pipeline_mode = #tpu.pipeline_mode<synchronous>, transform_indices = @transform_6, window_bounds = array<i64: 1, 128>}, {pipeline_mode = #tpu.pipeline_mode<synchronous>, transform_indices = @transform_7, window_bounds = array<i64: 128, 64>}, {pipeline_mode = #tpu.pipeline_mode<synchronous>, transform_indices = @transform_8, window_bounds = array<i64: 1, 64>}, {pipeline_mode = #tpu.pipeline_mode<synchronous>, transform_indices = @transform_9, window_bounds = array<i64: 64, 32>}, {pipeline_mode = #tpu.pipeline_mode<synchronous>, transform_indices = @transform_10, window_bounds = array<i64: 1, 32>}, {pipeline_mode = #tpu.pipeline_mode<synchronous>, transform_indices = @transform_11, window_bounds = array<i64: 32, 128>}, {pipeline_mode = #tpu.pipeline_mode<synchronous>, transform_indices = @transform_12, window_bounds = array<i64: 1, 128>}, {transform_indices = @transform_13, window_bounds = array<i64: 256, 13>}]} {
    %c0 = arith.constant 0 : index
    %c0_0 = arith.constant 0 : index
    %0 = vector.load %arg1[%c0, %c0_0] : memref<256x112xf32, #tpu.memory_space<vmem>>, vector<256x112xf32>
    %1 = arith.truncf %0 : vector<256x112xf32> to vector<256x112xbf16>
    %c0_1 = arith.constant 0 : index
    %c0_2 = arith.constant 0 : index
    %2 = vector.load %arg2[%c0_1, %c0_2] : memref<112x128xbf16, #tpu.memory_space<vmem>>, vector<112x128xbf16>
    %cst = arith.constant dense<0.000000e+00> : vector<256x128xf32>
    %3 = tpu.matmul %1, %2, %cst {dimension_numbers = #tpu.dot_dimension_numbers<[1], [0], [0], [1], [0, 0, 1, 1], [], []>} : vector<256x112xbf16>, vector<112x128xbf16>, vector<256x128xf32> -> vector<256x128xf32>
    %c0_3 = arith.constant 0 : index
    %c0_4 = arith.constant 0 : index
    %4 = vector.load %arg3[%c0_3, %c0_4] : memref<1x128xf32, #tpu.memory_space<vmem>>, vector<1x128xf32>
    %5 = vector.broadcast %4 : vector<1x128xf32> to vector<256x128xf32>
    %6 = arith.addf %3, %5 : vector<256x128xf32>
    %cst_5 = arith.constant 0.000000e+00 : f32
    %7 = vector.broadcast %cst_5 : f32 to vector<256x128xf32>
    %8 = arith.maximumf %6, %7 : vector<256x128xf32>
    %9 = arith.truncf %8 : vector<256x128xf32> to vector<256x128xbf16>
    %c0_6 = arith.constant 0 : index
    %c0_7 = arith.constant 0 : index
    %10 = vector.load %arg4[%c0_6, %c0_7] : memref<128x128xbf16, #tpu.memory_space<vmem>>, vector<128x128xbf16>
    %cst_8 = arith.constant dense<0.000000e+00> : vector<256x128xf32>
    %11 = tpu.matmul %9, %10, %cst_8 {dimension_numbers = #tpu.dot_dimension_numbers<[1], [0], [0], [1], [0, 0, 1, 1], [], []>} : vector<256x128xbf16>, vector<128x128xbf16>, vector<256x128xf32> -> vector<256x128xf32>
    %c0_9 = arith.constant 0 : index
    %c0_10 = arith.constant 0 : index
    %12 = vector.load %arg5[%c0_9, %c0_10] : memref<1x128xf32, #tpu.memory_space<vmem>>, vector<1x128xf32>
    %13 = vector.broadcast %12 : vector<1x128xf32> to vector<256x128xf32>
    %14 = arith.addf %11, %13 : vector<256x128xf32>
    %cst_11 = arith.constant 0.000000e+00 : f32
    %15 = vector.broadcast %cst_11 : f32 to vector<256x128xf32>
    %16 = arith.maximumf %14, %15 : vector<256x128xf32>
    %17 = arith.truncf %16 : vector<256x128xf32> to vector<256x128xbf16>
    %c0_12 = arith.constant 0 : index
    %c0_13 = arith.constant 0 : index
    %18 = vector.load %arg6[%c0_12, %c0_13] : memref<128x128xbf16, #tpu.memory_space<vmem>>, vector<128x128xbf16>
    %cst_14 = arith.constant dense<0.000000e+00> : vector<256x128xf32>
    %19 = tpu.matmul %17, %18, %cst_14 {dimension_numbers = #tpu.dot_dimension_numbers<[1], [0], [0], [1], [0, 0, 1, 1], [], []>} : vector<256x128xbf16>, vector<128x128xbf16>, vector<256x128xf32> -> vector<256x128xf32>
    %c0_15 = arith.constant 0 : index
    %c0_16 = arith.constant 0 : index
    %20 = vector.load %arg7[%c0_15, %c0_16] : memref<1x128xf32, #tpu.memory_space<vmem>>, vector<1x128xf32>
    %21 = vector.broadcast %20 : vector<1x128xf32> to vector<256x128xf32>
    %22 = arith.addf %19, %21 : vector<256x128xf32>
    %cst_17 = arith.constant 0.000000e+00 : f32
    %23 = vector.broadcast %cst_17 : f32 to vector<256x128xf32>
    %24 = arith.maximumf %22, %23 : vector<256x128xf32>
    %25 = arith.truncf %24 : vector<256x128xf32> to vector<256x128xbf16>
    %c0_18 = arith.constant 0 : index
    %c0_19 = arith.constant 0 : index
    %26 = vector.load %arg8[%c0_18, %c0_19] : memref<128x64xbf16, #tpu.memory_space<vmem>>, vector<128x64xbf16>
    %cst_20 = arith.constant dense<0.000000e+00> : vector<256x64xf32>
    %27 = tpu.matmul %25, %26, %cst_20 {dimension_numbers = #tpu.dot_dimension_numbers<[1], [0], [0], [1], [0, 0, 1, 1], [], []>} : vector<256x128xbf16>, vector<128x64xbf16>, vector<256x64xf32> -> vector<256x64xf32>
    %c0_21 = arith.constant 0 : index
    %c0_22 = arith.constant 0 : index
    %28 = vector.load %arg9[%c0_21, %c0_22] : memref<1x64xf32, #tpu.memory_space<vmem>>, vector<1x64xf32>
    %29 = vector.broadcast %28 : vector<1x64xf32> to vector<256x64xf32>
    %30 = arith.addf %27, %29 : vector<256x64xf32>
    %cst_23 = arith.constant 0.000000e+00 : f32
    %31 = vector.broadcast %cst_23 : f32 to vector<256x64xf32>
    %32 = arith.maximumf %30, %31 : vector<256x64xf32>
    %33 = arith.truncf %32 : vector<256x64xf32> to vector<256x64xbf16>
    %c0_24 = arith.constant 0 : index
    %c0_25 = arith.constant 0 : index
    %34 = vector.load %arg10[%c0_24, %c0_25] : memref<64x32xbf16, #tpu.memory_space<vmem>>, vector<64x32xbf16>
    %cst_26 = arith.constant dense<0.000000e+00> : vector<256x32xf32>
    %35 = tpu.matmul %33, %34, %cst_26 {dimension_numbers = #tpu.dot_dimension_numbers<[1], [0], [0], [1], [0, 0, 1, 1], [], []>} : vector<256x64xbf16>, vector<64x32xbf16>, vector<256x32xf32> -> vector<256x32xf32>
    %c0_27 = arith.constant 0 : index
    %c0_28 = arith.constant 0 : index
    %36 = vector.load %arg11[%c0_27, %c0_28] : memref<1x32xf32, #tpu.memory_space<vmem>>, vector<1x32xf32>
    %37 = vector.broadcast %36 : vector<1x32xf32> to vector<256x32xf32>
    %38 = arith.addf %35, %37 : vector<256x32xf32>
    %cst_29 = arith.constant 0.000000e+00 : f32
    %39 = vector.broadcast %cst_29 : f32 to vector<256x32xf32>
    %40 = arith.maximumf %38, %39 : vector<256x32xf32>
    %41 = arith.truncf %40 : vector<256x32xf32> to vector<256x32xbf16>
    %c0_30 = arith.constant 0 : index
    %c0_31 = arith.constant 0 : index
    %42 = vector.load %arg12[%c0_30, %c0_31] : memref<32x128xbf16, #tpu.memory_space<vmem>>, vector<32x128xbf16>
    %cst_32 = arith.constant dense<0.000000e+00> : vector<256x128xf32>
    %43 = tpu.matmul %41, %42, %cst_32 {dimension_numbers = #tpu.dot_dimension_numbers<[1], [0], [0], [1], [0, 0, 1, 1], [], []>} : vector<256x32xbf16>, vector<32x128xbf16>, vector<256x128xf32> -> vector<256x128xf32>
    %c0_33 = arith.constant 0 : index
    %c0_34 = arith.constant 0 : index
    %44 = vector.load %arg13[%c0_33, %c0_34] : memref<1x128xf32, #tpu.memory_space<vmem>>, vector<1x128xf32>
    %45 = vector.broadcast %44 : vector<1x128xf32> to vector<256x128xf32>
    %46 = arith.addf %43, %45 : vector<256x128xf32>
    %47 = vector.extract_strided_slice %46 {offsets = [0, 0], sizes = [256, 13], strides = [1, 1]} : vector<256x128xf32> to vector<256x13xf32>
    %c0_35 = arith.constant 0 : index
    %c0_36 = arith.constant 0 : index
    %48 = vector.load %arg14[%c0_35, %c0_36] : memref<256x13xf32, #tpu.memory_space<vmem>>, vector<256x13xf32>
    tpu.vector_store %arg14[%c0_35, %c0_36], %47 {strides = array<i32>} : memref<256x13xf32, #tpu.memory_space<vmem>>, vector<256x13xf32>,
    return
  }
  func.func @transform_0(%arg0: i32) -> (i32, i32) {
    %c0_i32 = arith.constant 0 : i32
    %c0_i32_0 = arith.constant 0 : i32
    return %arg0, %c0_i32 : i32, i32
  }
  func.func @transform_1(%arg0: i32) -> (i32, i32) {
    %c0_i32 = arith.constant 0 : i32
    %c0_i32_0 = arith.constant 0 : i32
    %c0_i32_1 = arith.constant 0 : i32
    return %c0_i32, %c0_i32_0 : i32, i32
  }
  func.func @transform_2(%arg0: i32) -> (i32, i32) {
    %c0_i32 = arith.constant 0 : i32
    %c0_i32_0 = arith.constant 0 : i32
    %c0_i32_1 = arith.constant 0 : i32
    return %c0_i32, %c0_i32_0 : i32, i32
  }
  func.func @transform_3(%arg0: i32) -> (i32, i32) {
    %c0_i32 = arith.constant 0 : i32
    %c0_i32_0 = arith.constant 0 : i32
    %c0_i32_1 = arith.constant 0 : i32
    return %c0_i32, %c0_i32_0 : i32, i32
  }
  func.func @transform_4(%arg0: i32) -> (i32, i32) {
    %c0_i32 = arith.constant 0 : i32
    %c0_i32_0 = arith.constant 0 : i32
    %c0_i32_1 = arith.constant 0 : i32
    return %c0_i32, %c0_i32_0 : i32, i32
  }
  func.func @transform_5(%arg0: i32) -> (i32, i32) {
    %c0_i32 = arith.constant 0 : i32
    %c0_i32_0 = arith.constant 0 : i32
    %c0_i32_1 = arith.constant 0 : i32
    return %c0_i32, %c0_i32_0 : i32, i32
  }
  func.func @transform_6(%arg0: i32) -> (i32, i32) {
    %c0_i32 = arith.constant 0 : i32
    %c0_i32_0 = arith.constant 0 : i32
    %c0_i32_1 = arith.constant 0 : i32
    return %c0_i32, %c0_i32_0 : i32, i32
  }
  func.func @transform_7(%arg0: i32) -> (i32, i32) {
    %c0_i32 = arith.constant 0 : i32
    %c0_i32_0 = arith.constant 0 : i32
    %c0_i32_1 = arith.constant 0 : i32
    return %c0_i32, %c0_i32_0 : i32, i32
  }
  func.func @transform_8(%arg0: i32) -> (i32, i32) {
    %c0_i32 = arith.constant 0 : i32
    %c0_i32_0 = arith.constant 0 : i32
    %c0_i32_1 = arith.constant 0 : i32
    return %c0_i32, %c0_i32_0 : i32, i32
  }
  func.func @transform_9(%arg0: i32) -> (i32, i32) {
    %c0_i32 = arith.constant 0 : i32
    %c0_i32_0 = arith.constant 0 : i32
    %c0_i32_1 = arith.constant 0 : i32
    return %c0_i32, %c0_i32_0 : i32, i32
  }
  func.func @transform_10(%arg0: i32) -> (i32, i32) {
    %c0_i32 = arith.constant 0 : i32
    %c0_i32_0 = arith.constant 0 : i32
    %c0_i32_1 = arith.constant 0 : i32
    return %c0_i32, %c0_i32_0 : i32, i32
  }
  func.func @transform_11(%arg0: i32) -> (i32, i32) {
    %c0_i32 = arith.constant 0 : i32
    %c0_i32_0 = arith.constant 0 : i32
    %c0_i32_1 = arith.constant 0 : i32
    return %c0_i32, %c0_i32_0 : i32, i32
  }
  func.func @transform_12(%arg0: i32) -> (i32, i32) {
    %c0_i32 = arith.constant 0 : i32
    %c0_i32_0 = arith.constant 0 : i32
    %c0_i32_1 = arith.constant 0 : i32
    return %c0_i32, %c0_i32_0 : i32, i32
  }
  func.func @transform_13(%arg0: i32) -> (i32, i32) {
    %c0_i32 = arith.constant 0 : i32
    %c0_i32_0 = arith.constant 0 : i32
    return %arg0, %c0_i32 : i32, i32
  }
}

</mosaic_0001>

<llo_original>
// kernel: _lambda_.1
$region0: #{_lambda_.1}
  #allocation0 [shape = 'u32[]', space=smem, size = 0x4, offset = 0x4, fixed_abs, tag = 'smem constant byte address 0x4 - core index']
  #allocation1 [shape = 'u32[144,128]{1,0:T(1,128)}', space=vmem, size = 0x12000, scoped, tag = 'internal scratch']
  %s0 = inlined_call_operand.vmem [shape: f32[256,112], index: 0, kind: input, shape index: {}]
  %s1 = inlined_call_operand.vmem [shape: bf16[112,128], index: 1, kind: input, shape index: {}]
  %s2 = inlined_call_operand.vmem [shape: f32[1,128], index: 2, kind: input, shape index: {}]
  %s3 = inlined_call_operand.vmem [shape: bf16[128,128], index: 3, kind: input, shape index: {}]
  %s4 = inlined_call_operand.vmem [shape: f32[1,128], index: 4, kind: input, shape index: {}]
  %s5 = inlined_call_operand.vmem [shape: bf16[128,128], index: 5, kind: input, shape index: {}]
  %s6 = inlined_call_operand.vmem [shape: f32[1,128], index: 6, kind: input, shape index: {}]
  %s7 = inlined_call_operand.vmem [shape: bf16[128,64], index: 7, kind: input, shape index: {}]
  %s8 = inlined_call_operand.vmem [shape: f32[1,64], index: 8, kind: input, shape index: {}]
  %s9 = inlined_call_operand.vmem [shape: bf16[64,32], index: 9, kind: input, shape index: {}]
  %s10 = inlined_call_operand.vmem [shape: f32[1,32], index: 10, kind: input, shape index: {}]
  %s11 = inlined_call_operand.vmem [shape: bf16[32,128], index: 11, kind: input, shape index: {}]
  %s12 = inlined_call_operand.vmem [shape: f32[1,128], index: 12, kind: input, shape index: {}]
  %s13 = inlined_call_operand.vmem [shape: f32[256,13], index: 13, kind: output, shape index: {}]
  %s14 = sld [smem:[#allocation0]]
  $region62: #{_lambda_.1} parent=0
    _
  %s16 = ssub.s32 1, %s14
  %s17 = scalar_select 0, %s16, %s14
  // Predicated region
  $region2: #{_lambda_.1} parent=0 // pred_check
    _
  $region3: #{_lambda_.1} parent=0 // pred_check_branch
    %19 = sbr.rel (0) target = $region5
  $region4: #{_lambda_.1} parent=0 // pred_region
    _
  $region5: #{_lambda_.1} parent=0 // pred_fallthru
    _
  // Predicated region
  $region6: #{_lambda_.1} parent=0 // pred_check
    _
  $region7: #{_lambda_.1} parent=0 // pred_check_branch
    %21 = sbr.rel (0) target = $region9
  $region8: #{_lambda_.1} parent=0 // pred_region
    _
  $region9: #{_lambda_.1} parent=0 // pred_fallthru
    _
  // Predicated region
  $region10: #{_lambda_.1} parent=0 // pred_check
    _
  $region11: #{_lambda_.1} parent=0 // pred_check_branch
    %23 = sbr.rel (0) target = $region13
  $region12: #{_lambda_.1} parent=0 // pred_region
    _
  $region13: #{_lambda_.1} parent=0 // pred_fallthru
    _
  // Predicated region
  $region14: #{_lambda_.1} parent=0 // pred_check
    _
  $region15: #{_lambda_.1} parent=0 // pred_check_branch
    %25 = sbr.rel (0) target = $region17
  $region16: #{_lambda_.1} parent=0 // pred_region
    _
  $region17: #{_lambda_.1} parent=0 // pred_fallthru
    _
  // Predicated region
  $region18: #{_lambda_.1} parent=0 // pred_check
    _
  $region19: #{_lambda_.1} parent=0 // pred_check_branch
    %27 = sbr.rel (0) target = $region21
  $region20: #{_lambda_.1} parent=0 // pred_region
    _
  $region21: #{_lambda_.1} parent=0 // pred_fallthru
    _
  // Predicated region
  $region22: #{_lambda_.1} parent=0 // pred_check
    _
  $region23: #{_lambda_.1} parent=0 // pred_check_branch
    %29 = sbr.rel (0) target = $region25
  $region24: #{_lambda_.1} parent=0 // pred_region
    _
  $region25: #{_lambda_.1} parent=0 // pred_fallthru
    _
  // Predicated region
  $region26: #{_lambda_.1} parent=0 // pred_check
    _
  $region27: #{_lambda_.1} parent=0 // pred_check_branch
    %31 = sbr.rel (0) target = $region29
  $region28: #{_lambda_.1} parent=0 // pred_region
    _
  $region29: #{_lambda_.1} parent=0 // pred_fallthru
    _
  // Predicated region
  $region30: #{_lambda_.1} parent=0 // pred_check
    _
  $region31: #{_lambda_.1} parent=0 // pred_check_branch
    %33 = sbr.rel (0) target = $region33
  $region32: #{_lambda_.1} parent=0 // pred_region
    _
  $region33: #{_lambda_.1} parent=0 // pred_fallthru
    _
  // Predicated region
  $region34: #{_lambda_.1} parent=0 // pred_check
    _
  $region35: #{_lambda_.1} parent=0 // pred_check_branch
    %35 = sbr.rel (0) target = $region37
  $region36: #{_lambda_.1} parent=0 // pred_region
    _
  $region37: #{_lambda_.1} parent=0 // pred_fallthru
    _
  // Predicated region
  $region38: #{_lambda_.1} parent=0 // pred_check
    _
  $region39: #{_lambda_.1} parent=0 // pred_check_branch
    %37 = sbr.rel (0) target = $region41
  $region40: #{_lambda_.1} parent=0 // pred_region
    _
  $region41: #{_lambda_.1} parent=0 // pred_fallthru
    _
  // Predicated region
  $region42: #{_lambda_.1} parent=0 // pred_check
    _
  $region43: #{_lambda_.1} parent=0 // pred_check_branch
    %39 = sbr.rel (0) target = $region45
  $region44: #{_lambda_.1} parent=0 // pred_region
    _
  $region45: #{_lambda_.1} parent=0 // pred_fallthru
    _
  // Predicated region
  $region46: #{_lambda_.1} parent=0 // pred_check
    _
  $region47: #{_lambda_.1} parent=0 // pred_check_branch
    %41 = sbr.rel (0) target = $region49
  $region48: #{_lambda_.1} parent=0 // pred_region
    _
  $region49: #{_lambda_.1} parent=0 // pred_fallthru
    _
  // Predicated region
  $region50: #{_lambda_.1} parent=0 // pred_check
    _
  $region51: #{_lambda_.1} parent=0 // pred_check_branch
    %43 = sbr.rel (0) target = $region53
  $region52: #{_lambda_.1} parent=0 // pred_region
    _
  $region53: #{_lambda_.1} parent=0 // pred_fallthru
    _
  %v45 = vld [vmem:[%s0] sm:$0xff]
  %v46 = vld [vmem:[%s0 + $0x8] sm:$0xff]
  %v47 = vld [vmem:[%s0 + $0x10] sm:$0xff]
  %v48 = vld [vmem:[%s0 + $0x18] sm:$0xff]
  %v49 = vld [vmem:[%s0 + $0x20] sm:$0xff]
  %v50 = vld [vmem:[%s0 + $0x28] sm:$0xff]
  %v51 = vld [vmem:[%s0 + $0x30] sm:$0xff]
  %v52 = vld [vmem:[%s0 + $0x38] sm:$0xff]
  %v53 = vld [vmem:[%s0 + $0x40] sm:$0xff]
  %v54 = vld [vmem:[%s0 + $0x48] sm:$0xff]
  %v55 = vld [vmem:[%s0 + $0x50] sm:$0xff]
  %v56 = vld [vmem:[%s0 + $0x58] sm:$0xff]
  %v57 = vld [vmem:[%s0 + $0x60] sm:$0xff]
  %v58 = vld [vmem:[%s0 + $0x68] sm:$0xff]
  %v59 = vld [vmem:[%s0 + $0x70] sm:$0xff]
  %v60 = vld [vmem:[%s0 + $0x78] sm:$0xff]
  %v61 = vld [vmem:[%s0 + $0x80] sm:$0xff]
  %v62 = vld [vmem:[%s0 + $0x88] sm:$0xff]
  %v63 = vld [vmem:[%s0 + $0x90] sm:$0xff]
  %v64 = vld [vmem:[%s0 + $0x98] sm:$0xff]
  %v65 = vld [vmem:[%s0 + $0xa0] sm:$0xff]
  %v66 = vld [vmem:[%s0 + $0xa8] sm:$0xff]
  %v67 = vld [vmem:[%s0 + $0xb0] sm:$0xff]
  %v68 = vld [vmem:[%s0 + $0xb8] sm:$0xff]
  %v69 = vld [vmem:[%s0 + $0xc0] sm:$0xff]
  %v70 = vld [vmem:[%s0 + $0xc8] sm:$0xff]
  %v71 = vld [vmem:[%s0 + $0xd0] sm:$0xff]
  %v72 = vld [vmem:[%s0 + $0xd8] sm:$0xff]
  %v73 = vld [vmem:[%s0 + $0xe0] sm:$0xff]
  %v74 = vld [vmem:[%s0 + $0xe8] sm:$0xff]
  %v75 = vld [vmem:[%s0 + $0xf0] sm:$0xff]
  %v76 = vld [vmem:[%s0 + $0xf8] sm:$0xff]
  %v77 = vpack.c.bf16 %v46, %v45
  %v78 = vpack.c.bf16 %v48, %v47
  %v79 = vpack.c.bf16 %v50, %v49
  %v80 = vpack.c.bf16 %v52, %v51
  %v81 = vpack.c.bf16 %v54, %v53
  %v82 = vpack.c.bf16 %v56, %v55
  %v83 = vpack.c.bf16 %v58, %v57
  %v84 = vpack.c.bf16 %v60, %v59
  %v85 = vpack.c.bf16 %v62, %v61
  %v86 = vpack.c.bf16 %v64, %v63
  %v87 = vpack.c.bf16 %v66, %v65
  %v88 = vpack.c.bf16 %v68, %v67
  %v89 = vpack.c.bf16 %v70, %v69
  %v90 = vpack.c.bf16 %v72, %v71
  %v91 = vpack.c.bf16 %v74, %v73
  %v92 = vpack.c.bf16 %v76, %v75
  %v93 = vld [vmem:[%s1] sm:$0xf]
  %v94 = vld [vmem:[%s1 + $0x4] sm:$0xf]
  %v95 = vld [vmem:[%s1 + $0x8] sm:$0xf]
  %v96 = vld [vmem:[%s1 + $0xc] sm:$0xf]
  %v97 = vld [vmem:[%s1 + $0x10] sm:$0xf]
  %v98 = vld [vmem:[%s1 + $0x14] sm:$0xf]
  %v99 = vld [vmem:[%s1 + $0x18] sm:$0xf]
  %v100 = vld [vmem:[%s1 + $0x1c] sm:$0xf]
  %v101 = vld [vmem:[%s1 + $0x20] sm:$0xf]
  %v102 = vld [vmem:[%s1 + $0x24] sm:$0xf]
  %v103 = vld [vmem:[%s1 + $0x28] sm:$0xf]
  %v104 = vld [vmem:[%s1 + $0x2c] sm:$0xf]
  %v105 = vld [vmem:[%s1 + $0x30] sm:$0xf]
  %v106 = vld [vmem:[%s1 + $0x34] sm:$0xf]
  %v107 = vld [vmem:[%s2] sm:$0x1]
  %v109 = vlaneseq
  %v110 = vshrl.u32 %v109, 7
  %v111 = vsub.s32 0, %v110
  %v112 = vrot.slane %v107, %v111
  %v128 = vunpack.c.l.b16 %v93
  %v129 = vunpack.c.l.b16 %v94
  %v130 = vunpack.c.l.b16 %v95
  %v131 = vunpack.c.l.b16 %v96
  %v132 = vunpack.c.l.b16 %v97
  %v133 = vunpack.c.l.b16 %v98
  %v134 = vunpack.c.l.b16 %v99
  %v135 = vunpack.c.l.b16 %v100
  %v136 = vunpack.c.l.b16 %v101
  %v137 = vunpack.c.l.b16 %v102
  %v138 = vunpack.c.l.b16 %v103
  %v139 = vunpack.c.l.b16 %v104
  %v140 = vunpack.c.l.b16 %v105
  %v141 = vunpack.c.l.b16 %v106
  %v142 = vpack.c.b16 %v129, %v128
  %v143 = vpack.c.b16 %v131, %v130
  %v144 = vpack.c.b16 %v133, %v132
  %v145 = vpack.c.b16 %v135, %v134
  %v146 = vpack.c.b16 %v137, %v136
  %v147 = vpack.c.b16 %v139, %v138
  %v148 = vpack.c.b16 %v141, %v140
  %vm156 = vcmask 916480
  %v158 = vsel %vm156, %v77, 0
  %v161 = vsel %vm156, %v78, 0
  %v164 = vsel %vm156, %v79, 0
  %v167 = vsel %vm156, %v80, 0
  %v170 = vsel %vm156, %v81, 0
  %v173 = vsel %vm156, %v82, 0
  %v176 = vsel %vm156, %v83, 0
  %v179 = vsel %vm156, %v84, 0
  %v182 = vsel %vm156, %v85, 0
  %v185 = vsel %vm156, %v86, 0
  %v188 = vsel %vm156, %v87, 0
  %v191 = vsel %vm156, %v88, 0
  %v194 = vsel %vm156, %v89, 0
  %v197 = vsel %vm156, %v90, 0
  %v200 = vsel %vm156, %v91, 0
  %v203 = vsel %vm156, %v92, 0
  %205 = vmatprep.subr.bf16.mxu0 0
  %206 = vmatpush1.bf16.msra.mxu0 %v142
  %207 = vmatprep.subr.bf16.mxu0 0
  %208 = vmatpush1.bf16.msra.mxu0 %v143
  %209 = vmatprep.subr.bf16.mxu0 0
  %210 = vmatpush1.bf16.msra.mxu0 %v144
  %211 = vmatprep.subr.bf16.mxu0 0
  %212 = vmatpush1.bf16.msra.mxu0 %v145
  %213 = vmatprep.subr.bf16.mxu0 0
  %214 = vmatpush1.bf16.msra.mxu0 %v146
  %215 = vmatprep.subr.bf16.mxu0 0
  %216 = vmatpush1.bf16.msra.mxu0 %v147
  %217 = vmatprep.subr.bf16.mxu0 0
  %218 = vmatpush1.bf16.msra.mxu0 %v148
  %219 = vmatprep.subr.bf16.mxu0 0
  %220 = vmatpush1.bf16.msra.mxu0 0
  %221 = vmatprep.subr.bf16.mxu0 0
  %222 = vmatpush1.bf16.msra.mxu0 0
  %223 = vmatprep.subr.bf16.mxu0 0
  %224 = vmatpush1.bf16.msra.mxu0 0
  %225 = vmatprep.subr.bf16.mxu0 0
  %226 = vmatpush1.bf16.msra.mxu0 0
  %227 = vmatprep.subr.bf16.mxu0 0
  %228 = vmatpush1.bf16.msra.mxu0 0
  %229 = vmatprep.subr.bf16.mxu0 0
  %230 = vmatpush1.bf16.msra.mxu0 0
  %231 = vmatprep.subr.bf16.mxu0 0
  %232 = vmatpush1.bf16.msra.mxu0 0
  %233 = vmatprep.subr.bf16.mxu0 0
  %234 = vmatpush1.bf16.msra.mxu0 0
  %235 = vmatprep.subr.bf16.mxu0 0
  %236 = vmatpush1.bf16.msra.mxu0 0
  %237 = vmatprep.mubr.bf16.mxu0 0
  %238 = vmatmul.mubr.bf16.gmra.mrb[0].mxu0 %v158
  %v239 = vpop.f32.mrb[0].mxu0
  %v240 = vadd.f32 %v112, %v239
  %v241 = vpop.f32.mrb[0].mxu0
  %v242 = vpop.f32.mrb[0].mxu0
  %v243 = vadd.f32 %v112, %v242
  %v244 = vpop.f32.mrb[0].mxu0
  %245 = vmatprep.mubr.bf16.mxu0 0
  %246 = vmatmul.mubr.bf16.gmra.mrb[0].mxu0 %v161
  %v247 = vpop.f32.mrb[0].mxu0
  %v248 = vadd.f32 %v112, %v247
  %v249 = vpop.f32.mrb[0].mxu0
  %v250 = vpop.f32.mrb[0].mxu0
  %v251 = vadd.f32 %v112, %v250
  %v252 = vpop.f32.mrb[0].mxu0
  %253 = vmatprep.mubr.bf16.mxu0 0
  %254 = vmatmul.mubr.bf16.gmra.mrb[0].mxu0 %v164
  %v255 = vpop.f32.mrb[0].mxu0
  %v256 = vadd.f32 %v112, %v255
  %v257 = vpop.f32.mrb[0].mxu0
  %v258 = vpop.f32.mrb[0].mxu0
  %v259 = vadd.f32 %v112, %v258
  %v260 = vpop.f32.mrb[0].mxu0
  %261 = vmatprep.mubr.bf16.mxu0 0
  %262 = vmatmul.mubr.bf16.gmra.mrb[0].mxu0 %v167
  %v263 = vpop.f32.mrb[0].mxu0
  %v264 = vadd.f32 %v112, %v263
  %v265 = vpop.f32.mrb[0].mxu0
  %v266 = vpop.f32.mrb[0].mxu0
  %v267 = vadd.f32 %v112, %v266
  %v268 = vpop.f32.mrb[0].mxu0
  %269 = vmatprep.mubr.bf16.mxu0 0
  %270 = vmatmul.mubr.bf16.gmra.mrb[0].mxu0 %v170
  %v271 = vpop.f32.mrb[0].mxu0
  %v272 = vadd.f32 %v112, %v271
  %v273 = vpop.f32.mrb[0].mxu0
  %v274 = vpop.f32.mrb[0].mxu0
  %v275 = vadd.f32 %v112, %v274
  %v276 = vpop.f32.mrb[0].mxu0
  %277 = vmatprep.mubr.bf16.mxu0 0
  %278 = vmatmul.mubr.bf16.gmra.mrb[0].mxu0 %v173
  %v279 = vpop.f32.mrb[0].mxu0
  %v280 = vadd.f32 %v112, %v279
  %v281 = vpop.f32.mrb[0].mxu0
  %v282 = vpop.f32.mrb[0].mxu0
  %v283 = vadd.f32 %v112, %v282
  %v284 = vpop.f32.mrb[0].mxu0
  %285 = vmatprep.mubr.bf16.mxu0 0
  %286 = vmatmul.mubr.bf16.gmra.mrb[0].mxu0 %v176
  %v287 = vpop.f32.mrb[0].mxu0
  %v288 = vadd.f32 %v112, %v287
  %v289 = vpop.f32.mrb[0].mxu0
  %v290 = vpop.f32.mrb[0].mxu0
  %v291 = vadd.f32 %v112, %v290
  %v292 = vpop.f32.mrb[0].mxu0
  %293 = vmatprep.mubr.bf16.mxu0 0
  %294 = vmatmul.mubr.bf16.gmra.mrb[0].mxu0 %v179
  %v295 = vpop.f32.mrb[0].mxu0
  %v296 = vadd.f32 %v112, %v295
  %v297 = vpop.f32.mrb[0].mxu0
  %v298 = vpop.f32.mrb[0].mxu0
  %v299 = vadd.f32 %v112, %v298
  %v300 = vpop.f32.mrb[0].mxu0
  %301 = vmatprep.mubr.bf16.mxu0 0
  %302 = vmatmul.mubr.bf16.gmra.mrb[0].mxu0 %v182
  %v303 = vpop.f32.mrb[0].mxu0
  %v304 = vadd.f32 %v112, %v303
  %v305 = vpop.f32.mrb[0].mxu0
  %v306 = vpop.f32.mrb[0].mxu0
  %v307 = vadd.f32 %v112, %v306
  %v308 = vpop.f32.mrb[0].mxu0
  %309 = vmatprep.mubr.bf16.mxu0 0
  %310 = vmatmul.mubr.bf16.gmra.mrb[0].mxu0 %v185
  %v311 = vpop.f32.mrb[0].mxu0
  %v312 = vadd.f32 %v112, %v311
  %v313 = vpop.f32.mrb[0].mxu0
  %v314 = vpop.f32.mrb[0].mxu0
  %v315 = vadd.f32 %v112, %v314
  %v316 = vpop.f32.mrb[0].mxu0
  %317 = vmatprep.mubr.bf16.mxu0 0
  %318 = vmatmul.mubr.bf16.gmra.mrb[0].mxu0 %v188
  %v319 = vpop.f32.mrb[0].mxu0
  %v320 = vadd.f32 %v112, %v319
  %v321 = vpop.f32.mrb[0].mxu0
  %v322 = vpop.f32.mrb[0].mxu0
  %v323 = vadd.f32 %v112, %v322
  %v324 = vpop.f32.mrb[0].mxu0
  %325 = vmatprep.mubr.bf16.mxu0 0
  %326 = vmatmul.mubr.bf16.gmra.mrb[0].mxu0 %v191
  %v327 = vpop.f32.mrb[0].mxu0
  %v328 = vadd.f32 %v112, %v327
  %v329 = vpop.f32.mrb[0].mxu0
  %v330 = vpop.f32.mrb[0].mxu0
  %v331 = vadd.f32 %v112, %v330
  %v332 = vpop.f32.mrb[0].mxu0
  %333 = vmatprep.mubr.bf16.mxu0 0
  %334 = vmatmul.mubr.bf16.gmra.mrb[0].mxu0 %v194
  %v335 = vpop.f32.mrb[0].mxu0
  %v336 = vadd.f32 %v112, %v335
  %v337 = vpop.f32.mrb[0].mxu0
  %v338 = vpop.f32.mrb[0].mxu0
  %v339 = vadd.f32 %v112, %v338
  %v340 = vpop.f32.mrb[0].mxu0
  %341 = vmatprep.mubr.bf16.mxu0 0
  %342 = vmatmul.mubr.bf16.gmra.mrb[0].mxu0 %v197
  %v343 = vpop.f32.mrb[0].mxu0
  %v344 = vadd.f32 %v112, %v343
  %v345 = vpop.f32.mrb[0].mxu0
  %v346 = vpop.f32.mrb[0].mxu0
  %v347 = vadd.f32 %v112, %v346
  %v348 = vpop.f32.mrb[0].mxu0
  %349 = vmatprep.mubr.bf16.mxu0 0
  %350 = vmatmul.mubr.bf16.gmra.mrb[0].mxu0 %v200
  %v351 = vpop.f32.mrb[0].mxu0
  %v352 = vadd.f32 %v112, %v351
  %v353 = vpop.f32.mrb[0].mxu0
  %v354 = vpop.f32.mrb[0].mxu0
  %v355 = vadd.f32 %v112, %v354
  %v356 = vpop.f32.mrb[0].mxu0
  %357 = vmatprep.mubr.bf16.mxu0 0
  %358 = vmatmul.mubr.bf16.gmra.mrb[0].mxu0 %v203
  %v359 = vpop.f32.mrb[0].mxu0
  %v360 = vadd.f32 %v112, %v359
  %v361 = vpop.f32.mrb[0].mxu0
  %v362 = vpop.f32.mrb[0].mxu0
  %v363 = vadd.f32 %v112, %v362
  %v364 = vpop.f32.mrb[0].mxu0
  %365 = vdwg.mxu0
  %v366 = vmax.f32 %v240, 0.0
  %v367 = vmax.f32 %v243, 0.0
  %v368 = vmax.f32 %v248, 0.0
  %v369 = vmax.f32 %v251, 0.0
  %v370 = vmax.f32 %v256, 0.0
  %v371 = vmax.f32 %v259, 0.0
  %v372 = vmax.f32 %v264, 0.0
  %v373 = vmax.f32 %v267, 0.0
  %v374 = vmax.f32 %v272, 0.0
  %v375 = vmax.f32 %v275, 0.0
  %v376 = vmax.f32 %v280, 0.0
  %v377 = vmax.f32 %v283, 0.0
  %v378 = vmax.f32 %v288, 0.0
  %v379 = vmax.f32 %v291, 0.0
  %v380 = vmax.f32 %v296, 0.0
  %v381 = vmax.f32 %v299, 0.0
  %v382 = vmax.f32 %v304, 0.0
  %v383 = vmax.f32 %v307, 0.0
  %v384 = vmax.f32 %v312, 0.0
  %v385 = vmax.f32 %v315, 0.0
  %v386 = vmax.f32 %v320, 0.0
  %v387 = vmax.f32 %v323, 0.0
  %v388 = vmax.f32 %v328, 0.0
  %v389 = vmax.f32 %v331, 0.0
  %v390 = vmax.f32 %v336, 0.0
  %v391 = vmax.f32 %v339, 0.0
  %v392 = vmax.f32 %v344, 0.0
  %v393 = vmax.f32 %v347, 0.0
  %v394 = vmax.f32 %v352, 0.0
  %v395 = vmax.f32 %v355, 0.0
  %v396 = vmax.f32 %v360, 0.0
  %v397 = vmax.f32 %v363, 0.0
  %v398 = vpack.c.bf16 %v367, %v366
  %v399 = vpack.c.bf16 %v369, %v368
  %v400 = vpack.c.bf16 %v371, %v370
  %v401 = vpack.c.bf16 %v373, %v372
  %v402 = vpack.c.bf16 %v375, %v374
  %v403 = vpack.c.bf16 %v377, %v376
  %v404 = vpack.c.bf16 %v379, %v378
  %v405 = vpack.c.bf16 %v381, %v380
  %v406 = vpack.c.bf16 %v383, %v382
  %v407 = vpack.c.bf16 %v385, %v384
  %v408 = vpack.c.bf16 %v387, %v386
  %v409 = vpack.c.bf16 %v389, %v388
  %v410 = vpack.c.bf16 %v391, %v390
  %v411 = vpack.c.bf16 %v393, %v392
  %v412 = vpack.c.bf16 %v395, %v394
  %v413 = vpack.c.bf16 %v397, %v396
  %v414 = vld [vmem:[%s3] sm:$0xf]
  %v415 = vld [vmem:[%s3 + $0x4] sm:$0xf]
  %v416 = vld [vmem:[%s3 + $0x8] sm:$0xf]
  %v417 = vld [vmem:[%s3 + $0xc] sm:$0xf]
  %v418 = vld [vmem:[%s3 + $0x10] sm:$0xf]
  %v419 = vld [vmem:[%s3 + $0x14] sm:$0xf]
  %v420 = vld [vmem:[%s3 + $0x18] sm:$0xf]
  %v421 = vld [vmem:[%s3 + $0x1c] sm:$0xf]
  %v422 = vld [vmem:[%s3 + $0x20] sm:$0xf]
  %v423 = vld [vmem:[%s3 + $0x24] sm:$0xf]
  %v424 = vld [vmem:[%s3 + $0x28] sm:$0xf]
  %v425 = vld [vmem:[%s3 + $0x2c] sm:$0xf]
  %v426 = vld [vmem:[%s3 + $0x30] sm:$0xf]
  %v427 = vld [vmem:[%s3 + $0x34] sm:$0xf]
  %v428 = vld [vmem:[%s3 + $0x38] sm:$0xf]
  %v429 = vld [vmem:[%s3 + $0x3c] sm:$0xf]
  %v430 = vld [vmem:[%s4] sm:$0x1]
  %v432 = vlaneseq
  %v433 = vshrl.u32 %v432, 7
  %v434 = vsub.s32 0, %v433
  %v435 = vrot.slane %v430, %v434
  %v453 = vunpack.c.l.b16 %v414
  %v454 = vunpack.c.l.b16 %v415
  %v455 = vunpack.c.l.b16 %v416
  %v456 = vunpack.c.l.b16 %v417
  %v457 = vunpack.c.l.b16 %v418
  %v458 = vunpack.c.l.b16 %v419
  %v459 = vunpack.c.l.b16 %v420
  %v460 = vunpack.c.l.b16 %v421
  %v461 = vunpack.c.l.b16 %v422
  %v462 = vunpack.c.l.b16 %v423
  %v463 = vunpack.c.l.b16 %v424
  %v464 = vunpack.c.l.b16 %v425
  %v465 = vunpack.c.l.b16 %v426
  %v466 = vunpack.c.l.b16 %v427
  %v467 = vunpack.c.l.b16 %v428
  %v468 = vunpack.c.l.b16 %v429
  %v469 = vpack.c.b16 %v454, %v453
  %v470 = vpack.c.b16 %v456, %v455
  %v471 = vpack.c.b16 %v458, %v457
  %v472 = vpack.c.b16 %v460, %v459
  %v473 = vpack.c.b16 %v462, %v461
  %v474 = vpack.c.b16 %v464, %v463
  %v475 = vpack.c.b16 %v466, %v465
  %v476 = vpack.c.b16 %v468, %v467
  %485 = vmatprep.subr.bf16.mxu0 0
  %486 = vmatpush1.bf16.msra.mxu0 %v469
  %487 = vmatprep.subr.bf16.mxu0 0
  %488 = vmatpush1.bf16.msra.mxu0 %v470
  %489 = vmatprep.subr.bf16.mxu0 0
  %490 = vmatpush1.bf16.msra.mxu0 %v471
  %491 = vmatprep.subr.bf16.mxu0 0
  %492 = vmatpush1.bf16.msra.mxu0 %v472
  %493 = vmatprep.subr.bf16.mxu0 0
  %494 = vmatpush1.bf16.msra.mxu0 %v473
  %495 = vmatprep.subr.bf16.mxu0 0
  %496 = vmatpush1.bf16.msra.mxu0 %v474
  %497 = vmatprep.subr.bf16.mxu0 0
  %498 = vmatpush1.bf16.msra.mxu0 %v475
  %499 = vmatprep.subr.bf16.mxu0 0
  %500 = vmatpush1.bf16.msra.mxu0 %v476
  %501 = vmatprep.subr.bf16.mxu0 0
  %502 = vmatpush1.bf16.msra.mxu0 0
  %503 = vmatprep.subr.bf16.mxu0 0
  %504 = vmatpush1.bf16.msra.mxu0 0
  %505 = vmatprep.subr.bf16.mxu0 0
  %506 = vmatpush1.bf16.msra.mxu0 0
  %507 = vmatprep.subr.bf16.mxu0 0
  %508 = vmatpush1.bf16.msra.mxu0 0
  %509 = vmatprep.subr.bf16.mxu0 0
  %510 = vmatpush1.bf16.msra.mxu0 0
  %511 = vmatprep.subr.bf16.mxu0 0
  %512 = vmatpush1.bf16.msra.mxu0 0
  %513 = vmatprep.subr.bf16.mxu0 0
  %514 = vmatpush1.bf16.msra.mxu0 0
  %515 = vmatprep.subr.bf16.mxu0 0
  %516 = vmatpush1.bf16.msra.mxu0 0
  %517 = vmatprep.mubr.bf16.mxu0 0
  %518 = vmatmul.mubr.bf16.gmra.mrb[0].mxu0 %v398
  %v519 = vpop.f32.mrb[0].mxu0
  %v520 = vadd.f32 %v435, %v519
  %v521 = vpop.f32.mrb[0].mxu0
  %v522 = vpop.f32.mrb[0].mxu0
  %v523 = vadd.f32 %v435, %v522
  %v524 = vpop.f32.mrb[0].mxu0
  %525 = vmatprep.mubr.bf16.mxu0 0
  %526 = vmatmul.mubr.bf16.gmra.mrb[0].mxu0 %v399
  %v527 = vpop.f32.mrb[0].mxu0
  %v528 = vadd.f32 %v435, %v527
  %v529 = vpop.f32.mrb[0].mxu0
  %v530 = vpop.f32.mrb[0].mxu0
  %v531 = vadd.f32 %v435, %v530
  %v532 = vpop.f32.mrb[0].mxu0
  %533 = vmatprep.mubr.bf16.mxu0 0
  %534 = vmatmul.mubr.bf16.gmra.mrb[0].mxu0 %v400
  %v535 = vpop.f32.mrb[0].mxu0
  %v536 = vadd.f32 %v435, %v535
  %v537 = vpop.f32.mrb[0].mxu0
  %v538 = vpop.f32.mrb[0].mxu0
  %v539 = vadd.f32 %v435, %v538
  %v540 = vpop.f32.mrb[0].mxu0
  %541 = vmatprep.mubr.bf16.mxu0 0
  %542 = vmatmul.mubr.bf16.gmra.mrb[0].mxu0 %v401
  %v543 = vpop.f32.mrb[0].mxu0
  %v544 = vadd.f32 %v435, %v543
  %v545 = vpop.f32.mrb[0].mxu0
  %v546 = vpop.f32.mrb[0].mxu0
  %v547 = vadd.f32 %v435, %v546
  %v548 = vpop.f32.mrb[0].mxu0
  %549 = vmatprep.mubr.bf16.mxu0 0
  %550 = vmatmul.mubr.bf16.gmra.mrb[0].mxu0 %v402
  %v551 = vpop.f32.mrb[0].mxu0
  %v552 = vadd.f32 %v435, %v551
  %v553 = vpop.f32.mrb[0].mxu0
  %v554 = vpop.f32.mrb[0].mxu0
  %v555 = vadd.f32 %v435, %v554
  %v556 = vpop.f32.mrb[0].mxu0
  %557 = vmatprep.mubr.bf16.mxu0 0
  %558 = vmatmul.mubr.bf16.gmra.mrb[0].mxu0 %v403
  %v559 = vpop.f32.mrb[0].mxu0
  %v560 = vadd.f32 %v435, %v559
  %v561 = vpop.f32.mrb[0].mxu0
  %v562 = vpop.f32.mrb[0].mxu0
  %v563 = vadd.f32 %v435, %v562
  %v564 = vpop.f32.mrb[0].mxu0
  %565 = vmatprep.mubr.bf16.mxu0 0
  %566 = vmatmul.mubr.bf16.gmra.mrb[0].mxu0 %v404
  %v567 = vpop.f32.mrb[0].mxu0
  %v568 = vadd.f32 %v435, %v567
  %v569 = vpop.f32.mrb[0].mxu0
  %v570 = vpop.f32.mrb[0].mxu0
  %v571 = vadd.f32 %v435, %v570
  %v572 = vpop.f32.mrb[0].mxu0
  %573 = vmatprep.mubr.bf16.mxu0 0
  %574 = vmatmul.mubr.bf16.gmra.mrb[0].mxu0 %v405
  %v575 = vpop.f32.mrb[0].mxu0
  %v576 = vadd.f32 %v435, %v575
  %v577 = vpop.f32.mrb[0].mxu0
  %v578 = vpop.f32.mrb[0].mxu0
  %v579 = vadd.f32 %v435, %v578
  %v580 = vpop.f32.mrb[0].mxu0
  %581 = vmatprep.mubr.bf16.mxu0 0
  %582 = vmatmul.mubr.bf16.gmra.mrb[0].mxu0 %v406
  %v583 = vpop.f32.mrb[0].mxu0
  %v584 = vadd.f32 %v435, %v583
  %v585 = vpop.f32.mrb[0].mxu0
  %v586 = vpop.f32.mrb[0].mxu0
  %v587 = vadd.f32 %v435, %v586
  %v588 = vpop.f32.mrb[0].mxu0
  %589 = vmatprep.mubr.bf16.mxu0 0
  %590 = vmatmul.mubr.bf16.gmra.mrb[0].mxu0 %v407
  %v591 = vpop.f32.mrb[0].mxu0
  %v592 = vadd.f32 %v435, %v591
  %v593 = vpop.f32.mrb[0].mxu0
  %v594 = vpop.f32.mrb[0].mxu0
  %v595 = vadd.f32 %v435, %v594
  %v596 = vpop.f32.mrb[0].mxu0
  %597 = vmatprep.mubr.bf16.mxu0 0
  %598 = vmatmul.mubr.bf16.gmra.mrb[0].mxu0 %v408
  %v599 = vpop.f32.mrb[0].mxu0
  %v600 = vadd.f32 %v435, %v599
  %v601 = vpop.f32.mrb[0].mxu0
  %v602 = vpop.f32.mrb[0].mxu0
  %v603 = vadd.f32 %v435, %v602
  %v604 = vpop.f32.mrb[0].mxu0
  %605 = vmatprep.mubr.bf16.mxu0 0
  %606 = vmatmul.mubr.bf16.gmra.mrb[0].mxu0 %v409
  %v607 = vpop.f32.mrb[0].mxu0
  %v608 = vadd.f32 %v435, %v607
  %v609 = vpop.f32.mrb[0].mxu0
  %v610 = vpop.f32.mrb[0].mxu0
  %v611 = vadd.f32 %v435, %v610
  %v612 = vpop.f32.mrb[0].mxu0
  %613 = vmatprep.mubr.bf16.mxu0 0
  %614 = vmatmul.mubr.bf16.gmra.mrb[0].mxu0 %v410
  %v615 = vpop.f32.mrb[0].mxu0
  %v616 = vadd.f32 %v435, %v615
  %v617 = vpop.f32.mrb[0].mxu0
  %v618 = vpop.f32.mrb[0].mxu0
  %v619 = vadd.f32 %v435, %v618
  %v620 = vpop.f32.mrb[0].mxu0
  %621 = vmatprep.mubr.bf16.mxu0 0
  %622 = vmatmul.mubr.bf16.gmra.mrb[0].mxu0 %v411
  %v623 = vpop.f32.mrb[0].mxu0
  %v624 = vadd.f32 %v435, %v623
  %v625 = vpop.f32.mrb[0].mxu0
  %v626 = vpop.f32.mrb[0].mxu0
  %v627 = vadd.f32 %v435, %v626
  %v628 = vpop.f32.mrb[0].mxu0
  %629 = vmatprep.mubr.bf16.mxu0 0
  %630 = vmatmul.mubr.bf16.gmra.mrb[0].mxu0 %v412
  %v631 = vpop.f32.mrb[0].mxu0
  %v632 = vadd.f32 %v435, %v631
  %v633 = vpop.f32.mrb[0].mxu0
  %v634 = vpop.f32.mrb[0].mxu0
  %v635 = vadd.f32 %v435, %v634
  %v636 = vpop.f32.mrb[0].mxu0
  %637 = vmatprep.mubr.bf16.mxu0 0
  %638 = vmatmul.mubr.bf16.gmra.mrb[0].mxu0 %v413
  %v639 = vpop.f32.mrb[0].mxu0
  %v640 = vadd.f32 %v435, %v639
  %v641 = vpop.f32.mrb[0].mxu0
  %v642 = vpop.f32.mrb[0].mxu0
  %v643 = vadd.f32 %v435, %v642
  %v644 = vpop.f32.mrb[0].mxu0
  %645 = vdwg.mxu0
  %v646 = vmax.f32 %v520, 0.0
  %v647 = vmax.f32 %v523, 0.0
  %v648 = vmax.f32 %v528, 0.0
  %v649 = vmax.f32 %v531, 0.0
  %v650 = vmax.f32 %v536, 0.0
  %v651 = vmax.f32 %v539, 0.0
  %v652 = vmax.f32 %v544, 0.0
  %v653 = vmax.f32 %v547, 0.0
  %v654 = vmax.f32 %v552, 0.0
  %v655 = vmax.f32 %v555, 0.0
  %v656 = vmax.f32 %v560, 0.0
  %v657 = vmax.f32 %v563, 0.0
  %v658 = vmax.f32 %v568, 0.0
  %v659 = vmax.f32 %v571, 0.0
  %v660 = vmax.f32 %v576, 0.0
  %v661 = vmax.f32 %v579, 0.0
  %v662 = vmax.f32 %v584, 0.0
  %v663 = vmax.f32 %v587, 0.0
  %v664 = vmax.f32 %v592, 0.0
  %v665 = vmax.f32 %v595, 0.0
  %v666 = vmax.f32 %v600, 0.0
  %v667 = vmax.f32 %v603, 0.0
  %v668 = vmax.f32 %v608, 0.0
  %v669 = vmax.f32 %v611, 0.0
  %v670 = vmax.f32 %v616, 0.0
  %v671 = vmax.f32 %v619, 0.0
  %v672 = vmax.f32 %v624, 0.0
  %v673 = vmax.f32 %v627, 0.0
  %v674 = vmax.f32 %v632, 0.0
  %v675 = vmax.f32 %v635, 0.0
  %v676 = vmax.f32 %v640, 0.0
  %v677 = vmax.f32 %v643, 0.0
  %v678 = vpack.c.bf16 %v647, %v646
  %v679 = vpack.c.bf16 %v649, %v648
  %v680 = vpack.c.bf16 %v651, %v650
  %v681 = vpack.c.bf16 %v653, %v652
  %v682 = vpack.c.bf16 %v655, %v654
  %v683 = vpack.c.bf16 %v657, %v656
  %v684 = vpack.c.bf16 %v659, %v658
  %v685 = vpack.c.bf16 %v661, %v660
  %v686 = vpack.c.bf16 %v663, %v662
  %v687 = vpack.c.bf16 %v665, %v664
  %v688 = vpack.c.bf16 %v667, %v666
  %v689 = vpack.c.bf16 %v669, %v668
  %v690 = vpack.c.bf16 %v671, %v670
  %v691 = vpack.c.bf16 %v673, %v672
  %v692 = vpack.c.bf16 %v675, %v674
  %v693 = vpack.c.bf16 %v677, %v676
  %v694 = vld [vmem:[%s5] sm:$0xf]
  %v695 = vld [vmem:[%s5 + $0x4] sm:$0xf]
  %v696 = vld [vmem:[%s5 + $0x8] sm:$0xf]
  %v697 = vld [vmem:[%s5 + $0xc] sm:$0xf]
  %v698 = vld [vmem:[%s5 + $0x10] sm:$0xf]
  %v699 = vld [vmem:[%s5 + $0x14] sm:$0xf]
  %v700 = vld [vmem:[%s5 + $0x18] sm:$0xf]
  %v701 = vld [vmem:[%s5 + $0x1c] sm:$0xf]
  %v702 = vld [vmem:[%s5 + $0x20] sm:$0xf]
  %v703 = vld [vmem:[%s5 + $0x24] sm:$0xf]
  %v704 = vld [vmem:[%s5 + $0x28] sm:$0xf]
  %v705 = vld [vmem:[%s5 + $0x2c] sm:$0xf]
  %v706 = vld [vmem:[%s5 + $0x30] sm:$0xf]
  %v707 = vld [vmem:[%s5 + $0x34] sm:$0xf]
  %v708 = vld [vmem:[%s5 + $0x38] sm:$0xf]
  %v709 = vld [vmem:[%s5 + $0x3c] sm:$0xf]
  %v710 = vld [vmem:[%s6] sm:$0x1]
  %v712 = vlaneseq
  %v713 = vshrl.u32 %v712, 7
  %v714 = vsub.s32 0, %v713
  %v715 = vrot.slane %v710, %v714
  %v733 = vunpack.c.l.b16 %v694
  %v734 = vunpack.c.l.b16 %v695
  %v735 = vunpack.c.l.b16 %v696
  %v736 = vunpack.c.l.b16 %v697
  %v737 = vunpack.c.l.b16 %v698
  %v738 = vunpack.c.l.b16 %v699
  %v739 = vunpack.c.l.b16 %v700
  %v740 = vunpack.c.l.b16 %v701
  %v741 = vunpack.c.l.b16 %v702
  %v742 = vunpack.c.l.b16 %v703
  %v743 = vunpack.c.l.b16 %v704
  %v744 = vunpack.c.l.b16 %v705
  %v745 = vunpack.c.l.b16 %v706
  %v746 = vunpack.c.l.b16 %v707
  %v747 = vunpack.c.l.b16 %v708
  %v748 = vunpack.c.l.b16 %v709
  %v749 = vpack.c.b16 %v734, %v733
  %v750 = vpack.c.b16 %v736, %v735
  %v751 = vpack.c.b16 %v738, %v737
  %v752 = vpack.c.b16 %v740, %v739
  %v753 = vpack.c.b16 %v742, %v741
  %v754 = vpack.c.b16 %v744, %v743
  %v755 = vpack.c.b16 %v746, %v745
  %v756 = vpack.c.b16 %v748, %v747
  %765 = vmatprep.subr.bf16.mxu0 0
  %766 = vmatpush1.bf16.msra.mxu0 %v749
  %767 = vmatprep.subr.bf16.mxu0 0
  %768 = vmatpush1.bf16.msra.mxu0 %v750
  %769 = vmatprep.subr.bf16.mxu0 0
  %770 = vmatpush1.bf16.msra.mxu0 %v751
  %771 = vmatprep.subr.bf16.mxu0 0
  %772 = vmatpush1.bf16.msra.mxu0 %v752
  %773 = vmatprep.subr.bf16.mxu0 0
  %774 = vmatpush1.bf16.msra.mxu0 %v753
  %775 = vmatprep.subr.bf16.mxu0 0
  %776 = vmatpush1.bf16.msra.mxu0 %v754
  %777 = vmatprep.subr.bf16.mxu0 0
  %778 = vmatpush1.bf16.msra.mxu0 %v755
  %779 = vmatprep.subr.bf16.mxu0 0
  %780 = vmatpush1.bf16.msra.mxu0 %v756
  %781 = vmatprep.subr.bf16.mxu0 0
  %782 = vmatpush1.bf16.msra.mxu0 0
  %783 = vmatprep.subr.bf16.mxu0 0
  %784 = vmatpush1.bf16.msra.mxu0 0
  %785 = vmatprep.subr.bf16.mxu0 0
  %786 = vmatpush1.bf16.msra.mxu0 0
  %787 = vmatprep.subr.bf16.mxu0 0
  %788 = vmatpush1.bf16.msra.mxu0 0
  %789 = vmatprep.subr.bf16.mxu0 0
  %790 = vmatpush1.bf16.msra.mxu0 0
  %791 = vmatprep.subr.bf16.mxu0 0
  %792 = vmatpush1.bf16.msra.mxu0 0
  %793 = vmatprep.subr.bf16.mxu0 0
  %794 = vmatpush1.bf16.msra.mxu0 0
  %795 = vmatprep.subr.bf16.mxu0 0
  %796 = vmatpush1.bf16.msra.mxu0 0
  %797 = vmatprep.mubr.bf16.mxu0 0
  %798 = vmatmul.mubr.bf16.gmra.mrb[0].mxu0 %v678
  %v799 = vpop.f32.mrb[0].mxu0
  %v800 = vadd.f32 %v715, %v799
  %v801 = vpop.f32.mrb[0].mxu0
  %v802 = vpop.f32.mrb[0].mxu0
  %v803 = vadd.f32 %v715, %v802
  %v804 = vpop.f32.mrb[0].mxu0
  %805 = vmatprep.mubr.bf16.mxu0 0
  %806 = vmatmul.mubr.bf16.gmra.mrb[0].mxu0 %v679
  %v807 = vpop.f32.mrb[0].mxu0
  %v808 = vadd.f32 %v715, %v807
  %v809 = vpop.f32.mrb[0].mxu0
  %v810 = vpop.f32.mrb[0].mxu0
  %v811 = vadd.f32 %v715, %v810
  %v812 = vpop.f32.mrb[0].mxu0
  %813 = vmatprep.mubr.bf16.mxu0 0
  %814 = vmatmul.mubr.bf16.gmra.mrb[0].mxu0 %v680
  %v815 = vpop.f32.mrb[0].mxu0
  %v816 = vadd.f32 %v715, %v815
  %v817 = vpop.f32.mrb[0].mxu0
  %v818 = vpop.f32.mrb[0].mxu0
  %v819 = vadd.f32 %v715, %v818
  %v820 = vpop.f32.mrb[0].mxu0
  %821 = vmatprep.mubr.bf16.mxu0 0
  %822 = vmatmul.mubr.bf16.gmra.mrb[0].mxu0 %v681
  %v823 = vpop.f32.mrb[0].mxu0
  %v824 = vadd.f32 %v715, %v823
  %v825 = vpop.f32.mrb[0].mxu0
  %v826 = vpop.f32.mrb[0].mxu0
  %v827 = vadd.f32 %v715, %v826
  %v828 = vpop.f32.mrb[0].mxu0
  %829 = vmatprep.mubr.bf16.mxu0 0
  %830 = vmatmul.mubr.bf16.gmra.mrb[0].mxu0 %v682
  %v831 = vpop.f32.mrb[0].mxu0
  %v832 = vadd.f32 %v715, %v831
  %v833 = vpop.f32.mrb[0].mxu0
  %v834 = vpop.f32.mrb[0].mxu0
  %v835 = vadd.f32 %v715, %v834
  %v836 = vpop.f32.mrb[0].mxu0
  %837 = vmatprep.mubr.bf16.mxu0 0
  %838 = vmatmul.mubr.bf16.gmra.mrb[0].mxu0 %v683
  %v839 = vpop.f32.mrb[0].mxu0
  %v840 = vadd.f32 %v715, %v839
  %v841 = vpop.f32.mrb[0].mxu0
  %v842 = vpop.f32.mrb[0].mxu0
  %v843 = vadd.f32 %v715, %v842
  %v844 = vpop.f32.mrb[0].mxu0
  %845 = vmatprep.mubr.bf16.mxu0 0
  %846 = vmatmul.mubr.bf16.gmra.mrb[0].mxu0 %v684
  %v847 = vpop.f32.mrb[0].mxu0
  %v848 = vadd.f32 %v715, %v847
  %v849 = vpop.f32.mrb[0].mxu0
  %v850 = vpop.f32.mrb[0].mxu0
  %v851 = vadd.f32 %v715, %v850
  %v852 = vpop.f32.mrb[0].mxu0
  %853 = vmatprep.mubr.bf16.mxu0 0
  %854 = vmatmul.mubr.bf16.gmra.mrb[0].mxu0 %v685
  %v855 = vpop.f32.mrb[0].mxu0
  %v856 = vadd.f32 %v715, %v855
  %v857 = vpop.f32.mrb[0].mxu0
  %v858 = vpop.f32.mrb[0].mxu0
  %v859 = vadd.f32 %v715, %v858
  %v860 = vpop.f32.mrb[0].mxu0
  %861 = vmatprep.mubr.bf16.mxu0 0
  %862 = vmatmul.mubr.bf16.gmra.mrb[0].mxu0 %v686
  %v863 = vpop.f32.mrb[0].mxu0
  %v864 = vadd.f32 %v715, %v863
  %v865 = vpop.f32.mrb[0].mxu0
  %v866 = vpop.f32.mrb[0].mxu0
  %v867 = vadd.f32 %v715, %v866
  %v868 = vpop.f32.mrb[0].mxu0
  %869 = vmatprep.mubr.bf16.mxu0 0
  %870 = vmatmul.mubr.bf16.gmra.mrb[0].mxu0 %v687
  %v871 = vpop.f32.mrb[0].mxu0
  %v872 = vadd.f32 %v715, %v871
  %v873 = vpop.f32.mrb[0].mxu0
  %v874 = vpop.f32.mrb[0].mxu0
  %v875 = vadd.f32 %v715, %v874
  %v876 = vpop.f32.mrb[0].mxu0
  %877 = vmatprep.mubr.bf16.mxu0 0
  %878 = vmatmul.mubr.bf16.gmra.mrb[0].mxu0 %v688
  %v879 = vpop.f32.mrb[0].mxu0
  %v880 = vadd.f32 %v715, %v879
  %v881 = vpop.f32.mrb[0].mxu0
  %v882 = vpop.f32.mrb[0].mxu0
  %v883 = vadd.f32 %v715, %v882
  %v884 = vpop.f32.mrb[0].mxu0
  %885 = vmatprep.mubr.bf16.mxu0 0
  %886 = vmatmul.mubr.bf16.gmra.mrb[0].mxu0 %v689
  %v887 = vpop.f32.mrb[0].mxu0
  %v888 = vadd.f32 %v715, %v887
  %v889 = vpop.f32.mrb[0].mxu0
  %v890 = vpop.f32.mrb[0].mxu0
  %v891 = vadd.f32 %v715, %v890
  %v892 = vpop.f32.mrb[0].mxu0
  %893 = vmatprep.mubr.bf16.mxu0 0
  %894 = vmatmul.mubr.bf16.gmra.mrb[0].mxu0 %v690
  %v895 = vpop.f32.mrb[0].mxu0
  %v896 = vadd.f32 %v715, %v895
  %v897 = vpop.f32.mrb[0].mxu0
  %v898 = vpop.f32.mrb[0].mxu0
  %v899 = vadd.f32 %v715, %v898
  %v900 = vpop.f32.mrb[0].mxu0
  %901 = vmatprep.mubr.bf16.mxu0 0
  %902 = vmatmul.mubr.bf16.gmra.mrb[0].mxu0 %v691
  %v903 = vpop.f32.mrb[0].mxu0
  %v904 = vadd.f32 %v715, %v903
  %v905 = vpop.f32.mrb[0].mxu0
  %v906 = vpop.f32.mrb[0].mxu0
  %v907 = vadd.f32 %v715, %v906
  %v908 = vpop.f32.mrb[0].mxu0
  %909 = vmatprep.mubr.bf16.mxu0 0
  %910 = vmatmul.mubr.bf16.gmra.mrb[0].mxu0 %v692
  %v911 = vpop.f32.mrb[0].mxu0
  %v912 = vadd.f32 %v715, %v911
  %v913 = vpop.f32.mrb[0].mxu0
  %v914 = vpop.f32.mrb[0].mxu0
  %v915 = vadd.f32 %v715, %v914
  %v916 = vpop.f32.mrb[0].mxu0
  %917 = vmatprep.mubr.bf16.mxu0 0
  %918 = vmatmul.mubr.bf16.gmra.mrb[0].mxu0 %v693
  %v919 = vpop.f32.mrb[0].mxu0
  %v920 = vadd.f32 %v715, %v919
  %v921 = vpop.f32.mrb[0].mxu0
  %v922 = vpop.f32.mrb[0].mxu0
  %v923 = vadd.f32 %v715, %v922
  %v924 = vpop.f32.mrb[0].mxu0
  %925 = vdwg.mxu0
  %v926 = vmax.f32 %v800, 0.0
  %v927 = vmax.f32 %v803, 0.0
  %v928 = vmax.f32 %v808, 0.0
  %v929 = vmax.f32 %v811, 0.0
  %v930 = vmax.f32 %v816, 0.0
  %v931 = vmax.f32 %v819, 0.0
  %v932 = vmax.f32 %v824, 0.0
  %v933 = vmax.f32 %v827, 0.0
  %v934 = vmax.f32 %v832, 0.0
  %v935 = vmax.f32 %v835, 0.0
  %v936 = vmax.f32 %v840, 0.0
  %v937 = vmax.f32 %v843, 0.0
  %v938 = vmax.f32 %v848, 0.0
  %v939 = vmax.f32 %v851, 0.0
  %v940 = vmax.f32 %v856, 0.0
  %v941 = vmax.f32 %v859, 0.0
  %v942 = vmax.f32 %v864, 0.0
  %v943 = vmax.f32 %v867, 0.0
  %v944 = vmax.f32 %v872, 0.0
  %v945 = vmax.f32 %v875, 0.0
  %v946 = vmax.f32 %v880, 0.0
  %v947 = vmax.f32 %v883, 0.0
  %v948 = vmax.f32 %v888, 0.0
  %v949 = vmax.f32 %v891, 0.0
  %v950 = vmax.f32 %v896, 0.0
  %v951 = vmax.f32 %v899, 0.0
  %v952 = vmax.f32 %v904, 0.0
  %v953 = vmax.f32 %v907, 0.0
  %v954 = vmax.f32 %v912, 0.0
  %v955 = vmax.f32 %v915, 0.0
  %v956 = vmax.f32 %v920, 0.0
  %v957 = vmax.f32 %v923, 0.0
  %v958 = vpack.c.bf16 %v927, %v926
  %v959 = vpack.c.bf16 %v929, %v928
  %v960 = vpack.c.bf16 %v931, %v930
  %v961 = vpack.c.bf16 %v933, %v932
  %v962 = vpack.c.bf16 %v935, %v934
  %v963 = vpack.c.bf16 %v937, %v936
  %v964 = vpack.c.bf16 %v939, %v938
  %v965 = vpack.c.bf16 %v941, %v940
  %v966 = vpack.c.bf16 %v943, %v942
  %v967 = vpack.c.bf16 %v945, %v944
  %v968 = vpack.c.bf16 %v947, %v946
  %v969 = vpack.c.bf16 %v949, %v948
  %v970 = vpack.c.bf16 %v951, %v950
  %v971 = vpack.c.bf16 %v953, %v952
  %v972 = vpack.c.bf16 %v955, %v954
  %v973 = vpack.c.bf16 %v957, %v956
  %v974 = vld [vmem:[%s7] sm:$0xf]
  %v975 = vld [vmem:[%s7 + $0x4] sm:$0xf]
  %v976 = vld [vmem:[%s7 + $0x8] sm:$0xf]
  %v977 = vld [vmem:[%s7 + $0xc] sm:$0xf]
  %v978 = vld [vmem:[%s7 + $0x10] sm:$0xf]
  %v979 = vld [vmem:[%s7 + $0x14] sm:$0xf]
  %v980 = vld [vmem:[%s7 + $0x18] sm:$0xf]
  %v981 = vld [vmem:[%s7 + $0x1c] sm:$0xf]
  %v982 = vld [vmem:[%s7 + $0x20] sm:$0xf]
  %v983 = vld [vmem:[%s7 + $0x24] sm:$0xf]
  %v984 = vld [vmem:[%s7 + $0x28] sm:$0xf]
  %v985 = vld [vmem:[%s7 + $0x2c] sm:$0xf]
  %v986 = vld [vmem:[%s7 + $0x30] sm:$0xf]
  %v987 = vld [vmem:[%s7 + $0x34] sm:$0xf]
  %v988 = vld [vmem:[%s7 + $0x38] sm:$0xf]
  %v989 = vld [vmem:[%s7 + $0x3c] sm:$0xf]
  %v990 = vld [vmem:[%s8] sm:$0x1]
  %v992 = vlaneseq
  %v993 = vshrl.u32 %v992, 7
  %v994 = vsub.s32 0, %v993
  %v995 = vrot.slane %v990, %v994
  %v1013 = vunpack.c.l.b16 %v974
  %v1014 = vunpack.c.l.b16 %v975
  %v1015 = vunpack.c.l.b16 %v976
  %v1016 = vunpack.c.l.b16 %v977
  %v1017 = vunpack.c.l.b16 %v978
  %v1018 = vunpack.c.l.b16 %v979
  %v1019 = vunpack.c.l.b16 %v980
  %v1020 = vunpack.c.l.b16 %v981
  %v1021 = vunpack.c.l.b16 %v982
  %v1022 = vunpack.c.l.b16 %v983
  %v1023 = vunpack.c.l.b16 %v984
  %v1024 = vunpack.c.l.b16 %v985
  %v1025 = vunpack.c.l.b16 %v986
  %v1026 = vunpack.c.l.b16 %v987
  %v1027 = vunpack.c.l.b16 %v988
  %v1028 = vunpack.c.l.b16 %v989
  %v1029 = vpack.c.b16 %v1014, %v1013
  %v1030 = vpack.c.b16 %v1016, %v1015
  %v1031 = vpack.c.b16 %v1018, %v1017
  %v1032 = vpack.c.b16 %v1020, %v1019
  %v1033 = vpack.c.b16 %v1022, %v1021
  %v1034 = vpack.c.b16 %v1024, %v1023
  %v1035 = vpack.c.b16 %v1026, %v1025
  %v1036 = vpack.c.b16 %v1028, %v1027
  %1045 = vmatprep.subr.bf16.mxu0 0
  %1046 = vmatpush1.bf16.msra.mxu0 %v1029
  %1047 = vmatprep.subr.bf16.mxu0 0
  %1048 = vmatpush1.bf16.msra.mxu0 %v1030
  %1049 = vmatprep.subr.bf16.mxu0 0
  %1050 = vmatpush1.bf16.msra.mxu0 %v1031
  %1051 = vmatprep.subr.bf16.mxu0 0
  %1052 = vmatpush1.bf16.msra.mxu0 %v1032
  %1053 = vmatprep.subr.bf16.mxu0 0
  %1054 = vmatpush1.bf16.msra.mxu0 %v1033
  %1055 = vmatprep.subr.bf16.mxu0 0
  %1056 = vmatpush1.bf16.msra.mxu0 %v1034
  %1057 = vmatprep.subr.bf16.mxu0 0
  %1058 = vmatpush1.bf16.msra.mxu0 %v1035
  %1059 = vmatprep.subr.bf16.mxu0 0
  %1060 = vmatpush1.bf16.msra.mxu0 %v1036
  %1061 = vmatprep.subr.bf16.mxu0 0
  %1062 = vmatpush1.bf16.msra.mxu0 0
  %1063 = vmatprep.subr.bf16.mxu0 0
  %1064 = vmatpush1.bf16.msra.mxu0 0
  %1065 = vmatprep.subr.bf16.mxu0 0
  %1066 = vmatpush1.bf16.msra.mxu0 0
  %1067 = vmatprep.subr.bf16.mxu0 0
  %1068 = vmatpush1.bf16.msra.mxu0 0
  %1069 = vmatprep.subr.bf16.mxu0 0
  %1070 = vmatpush1.bf16.msra.mxu0 0
  %1071 = vmatprep.subr.bf16.mxu0 0
  %1072 = vmatpush1.bf16.msra.mxu0 0
  %1073 = vmatprep.subr.bf16.mxu0 0
  %1074 = vmatpush1.bf16.msra.mxu0 0
  %1075 = vmatprep.subr.bf16.mxu0 0
  %1076 = vmatpush1.bf16.msra.mxu0 0
  %1077 = vmatprep.mubr.bf16.mxu0 0
  %1078 = vmatmul.mubr.bf16.gmra.mrb[0].mxu0 %v958
  %v1079 = vpop.f32.mrb[0].mxu0
  %v1080 = vadd.f32 %v995, %v1079
  %v1081 = vpop.f32.mrb[0].mxu0
  %v1082 = vpop.f32.mrb[0].mxu0
  %v1083 = vadd.f32 %v995, %v1082
  %v1084 = vpop.f32.mrb[0].mxu0
  %1085 = vmatprep.mubr.bf16.mxu0 0
  %1086 = vmatmul.mubr.bf16.gmra.mrb[0].mxu0 %v959
  %v1087 = vpop.f32.mrb[0].mxu0
  %v1088 = vadd.f32 %v995, %v1087
  %v1089 = vpop.f32.mrb[0].mxu0
  %v1090 = vpop.f32.mrb[0].mxu0
  %v1091 = vadd.f32 %v995, %v1090
  %v1092 = vpop.f32.mrb[0].mxu0
  %1093 = vmatprep.mubr.bf16.mxu0 0
  %1094 = vmatmul.mubr.bf16.gmra.mrb[0].mxu0 %v960
  %v1095 = vpop.f32.mrb[0].mxu0
  %v1096 = vadd.f32 %v995, %v1095
  %v1097 = vpop.f32.mrb[0].mxu0
  %v1098 = vpop.f32.mrb[0].mxu0
  %v1099 = vadd.f32 %v995, %v1098
  %v1100 = vpop.f32.mrb[0].mxu0
  %1101 = vmatprep.mubr.bf16.mxu0 0
  %1102 = vmatmul.mubr.bf16.gmra.mrb[0].mxu0 %v961
  %v1103 = vpop.f32.mrb[0].mxu0
  %v1104 = vadd.f32 %v995, %v1103
  %v1105 = vpop.f32.mrb[0].mxu0
  %v1106 = vpop.f32.mrb[0].mxu0
  %v1107 = vadd.f32 %v995, %v1106
  %v1108 = vpop.f32.mrb[0].mxu0
  %1109 = vmatprep.mubr.bf16.mxu0 0
  %1110 = vmatmul.mubr.bf16.gmra.mrb[0].mxu0 %v962
  %v1111 = vpop.f32.mrb[0].mxu0
  %v1112 = vadd.f32 %v995, %v1111
  %v1113 = vpop.f32.mrb[0].mxu0
  %v1114 = vpop.f32.mrb[0].mxu0
  %v1115 = vadd.f32 %v995, %v1114
  %v1116 = vpop.f32.mrb[0].mxu0
  %1117 = vmatprep.mubr.bf16.mxu0 0
  %1118 = vmatmul.mubr.bf16.gmra.mrb[0].mxu0 %v963
  %v1119 = vpop.f32.mrb[0].mxu0
  %v1120 = vadd.f32 %v995, %v1119
  %v1121 = vpop.f32.mrb[0].mxu0
  %v1122 = vpop.f32.mrb[0].mxu0
  %v1123 = vadd.f32 %v995, %v1122
  %v1124 = vpop.f32.mrb[0].mxu0
  %1125 = vmatprep.mubr.bf16.mxu0 0
  %1126 = vmatmul.mubr.bf16.gmra.mrb[0].mxu0 %v964
  %v1127 = vpop.f32.mrb[0].mxu0
  %v1128 = vadd.f32 %v995, %v1127
  %v1129 = vpop.f32.mrb[0].mxu0
  %v1130 = vpop.f32.mrb[0].mxu0
  %v1131 = vadd.f32 %v995, %v1130
  %v1132 = vpop.f32.mrb[0].mxu0
  %1133 = vmatprep.mubr.bf16.mxu0 0
  %1134 = vmatmul.mubr.bf16.gmra.mrb[0].mxu0 %v965
  %v1135 = vpop.f32.mrb[0].mxu0
  %v1136 = vadd.f32 %v995, %v1135
  %v1137 = vpop.f32.mrb[0].mxu0
  %v1138 = vpop.f32.mrb[0].mxu0
  %v1139 = vadd.f32 %v995, %v1138
  %v1140 = vpop.f32.mrb[0].mxu0
  %1141 = vmatprep.mubr.bf16.mxu0 0
  %1142 = vmatmul.mubr.bf16.gmra.mrb[0].mxu0 %v966
  %v1143 = vpop.f32.mrb[0].mxu0
  %v1144 = vadd.f32 %v995, %v1143
  %v1145 = vpop.f32.mrb[0].mxu0
  %v1146 = vpop.f32.mrb[0].mxu0
  %v1147 = vadd.f32 %v995, %v1146
  %v1148 = vpop.f32.mrb[0].mxu0
  %1149 = vmatprep.mubr.bf16.mxu0 0
  %1150 = vmatmul.mubr.bf16.gmra.mrb[0].mxu0 %v967
  %v1151 = vpop.f32.mrb[0].mxu0
  %v1152 = vadd.f32 %v995, %v1151
  %v1153 = vpop.f32.mrb[0].mxu0
  %v1154 = vpop.f32.mrb[0].mxu0
  %v1155 = vadd.f32 %v995, %v1154
  %v1156 = vpop.f32.mrb[0].mxu0
  %1157 = vmatprep.mubr.bf16.mxu0 0
  %1158 = vmatmul.mubr.bf16.gmra.mrb[0].mxu0 %v968
  %v1159 = vpop.f32.mrb[0].mxu0
  %v1160 = vadd.f32 %v995, %v1159
  %v1161 = vpop.f32.mrb[0].mxu0
  %v1162 = vpop.f32.mrb[0].mxu0
  %v1163 = vadd.f32 %v995, %v1162
  %v1164 = vpop.f32.mrb[0].mxu0
  %1165 = vmatprep.mubr.bf16.mxu0 0
  %1166 = vmatmul.mubr.bf16.gmra.mrb[0].mxu0 %v969
  %v1167 = vpop.f32.mrb[0].mxu0
  %v1168 = vadd.f32 %v995, %v1167
  %v1169 = vpop.f32.mrb[0].mxu0
  %v1170 = vpop.f32.mrb[0].mxu0
  %v1171 = vadd.f32 %v995, %v1170
  %v1172 = vpop.f32.mrb[0].mxu0
  %1173 = vmatprep.mubr.bf16.mxu0 0
  %1174 = vmatmul.mubr.bf16.gmra.mrb[0].mxu0 %v970
  %v1175 = vpop.f32.mrb[0].mxu0
  %v1176 = vadd.f32 %v995, %v1175
  %v1177 = vpop.f32.mrb[0].mxu0
  %v1178 = vpop.f32.mrb[0].mxu0
  %v1179 = vadd.f32 %v995, %v1178
  %v1180 = vpop.f32.mrb[0].mxu0
  %1181 = vmatprep.mubr.bf16.mxu0 0
  %1182 = vmatmul.mubr.bf16.gmra.mrb[0].mxu0 %v971
  %v1183 = vpop.f32.mrb[0].mxu0
  %v1184 = vadd.f32 %v995, %v1183
  %v1185 = vpop.f32.mrb[0].mxu0
  %v1186 = vpop.f32.mrb[0].mxu0
  %v1187 = vadd.f32 %v995, %v1186
  %v1188 = vpop.f32.mrb[0].mxu0
  %1189 = vmatprep.mubr.bf16.mxu0 0
  %1190 = vmatmul.mubr.bf16.gmra.mrb[0].mxu0 %v972
  %v1191 = vpop.f32.mrb[0].mxu0
  %v1192 = vadd.f32 %v995, %v1191
  %v1193 = vpop.f32.mrb[0].mxu0
  %v1194 = vpop.f32.mrb[0].mxu0
  %v1195 = vadd.f32 %v995, %v1194
  %v1196 = vpop.f32.mrb[0].mxu0
  %1197 = vmatprep.mubr.bf16.mxu0 0
  %1198 = vmatmul.mubr.bf16.gmra.mrb[0].mxu0 %v973
  %v1199 = vpop.f32.mrb[0].mxu0
  %v1200 = vadd.f32 %v995, %v1199
  %v1201 = vpop.f32.mrb[0].mxu0
  %v1202 = vpop.f32.mrb[0].mxu0
  %v1203 = vadd.f32 %v995, %v1202
  %v1204 = vpop.f32.mrb[0].mxu0
  %1205 = vdwg.mxu0
  %v1206 = vmax.f32 %v1080, 0.0
  %v1207 = vmax.f32 %v1083, 0.0
  %v1208 = vmax.f32 %v1088, 0.0
  %v1209 = vmax.f32 %v1091, 0.0
  %v1210 = vmax.f32 %v1096, 0.0
  %v1211 = vmax.f32 %v1099, 0.0
  %v1212 = vmax.f32 %v1104, 0.0
  %v1213 = vmax.f32 %v1107, 0.0
  %v1214 = vmax.f32 %v1112, 0.0
  %v1215 = vmax.f32 %v1115, 0.0
  %v1216 = vmax.f32 %v1120, 0.0
  %v1217 = vmax.f32 %v1123, 0.0
  %v1218 = vmax.f32 %v1128, 0.0
  %v1219 = vmax.f32 %v1131, 0.0
  %v1220 = vmax.f32 %v1136, 0.0
  %v1221 = vmax.f32 %v1139, 0.0
  %v1222 = vmax.f32 %v1144, 0.0
  %v1223 = vmax.f32 %v1147, 0.0
  %v1224 = vmax.f32 %v1152, 0.0
  %v1225 = vmax.f32 %v1155, 0.0
  %v1226 = vmax.f32 %v1160, 0.0
  %v1227 = vmax.f32 %v1163, 0.0
  %v1228 = vmax.f32 %v1168, 0.0
  %v1229 = vmax.f32 %v1171, 0.0
  %v1230 = vmax.f32 %v1176, 0.0
  %v1231 = vmax.f32 %v1179, 0.0
  %v1232 = vmax.f32 %v1184, 0.0
  %v1233 = vmax.f32 %v1187, 0.0
  %v1234 = vmax.f32 %v1192, 0.0
  %v1235 = vmax.f32 %v1195, 0.0
  %v1236 = vmax.f32 %v1200, 0.0
  %v1237 = vmax.f32 %v1203, 0.0
  %v1238 = vpack.c.bf16 %v1207, %v1206
  %v1239 = vpack.c.bf16 %v1209, %v1208
  %v1240 = vpack.c.bf16 %v1211, %v1210
  %v1241 = vpack.c.bf16 %v1213, %v1212
  %v1242 = vpack.c.bf16 %v1215, %v1214
  %v1243 = vpack.c.bf16 %v1217, %v1216
  %v1244 = vpack.c.bf16 %v1219, %v1218
  %v1245 = vpack.c.bf16 %v1221, %v1220
  %v1246 = vpack.c.bf16 %v1223, %v1222
  %v1247 = vpack.c.bf16 %v1225, %v1224
  %v1248 = vpack.c.bf16 %v1227, %v1226
  %v1249 = vpack.c.bf16 %v1229, %v1228
  %v1250 = vpack.c.bf16 %v1231, %v1230
  %v1251 = vpack.c.bf16 %v1233, %v1232
  %v1252 = vpack.c.bf16 %v1235, %v1234
  %v1253 = vpack.c.bf16 %v1237, %v1236
  %v1254 = vld [vmem:[%s9] sm:$0xf]
  %v1255 = vld [vmem:[%s9 + $0x4] sm:$0xf]
  %v1256 = vld [vmem:[%s9 + $0x8] sm:$0xf]
  %v1257 = vld [vmem:[%s9 + $0xc] sm:$0xf]
  %v1258 = vld [vmem:[%s9 + $0x10] sm:$0xf]
  %v1259 = vld [vmem:[%s9 + $0x14] sm:$0xf]
  %v1260 = vld [vmem:[%s9 + $0x18] sm:$0xf]
  %v1261 = vld [vmem:[%s9 + $0x1c] sm:$0xf]
  %v1262 = vld [vmem:[%s10] sm:$0x1]
  %v1264 = vlaneseq
  %v1265 = vshrl.u32 %v1264, 7
  %v1266 = vsub.s32 0, %v1265
  %v1267 = vrot.slane %v1262, %v1266
  %v1277 = vunpack.c.l.b16 %v1254
  %v1278 = vunpack.c.l.b16 %v1255
  %v1279 = vunpack.c.l.b16 %v1256
  %v1280 = vunpack.c.l.b16 %v1257
  %v1281 = vunpack.c.l.b16 %v1258
  %v1282 = vunpack.c.l.b16 %v1259
  %v1283 = vunpack.c.l.b16 %v1260
  %v1284 = vunpack.c.l.b16 %v1261
  %v1285 = vpack.c.b16 %v1278, %v1277
  %v1286 = vpack.c.b16 %v1280, %v1279
  %v1287 = vpack.c.b16 %v1282, %v1281
  %v1288 = vpack.c.b16 %v1284, %v1283
  %vm1293 = vcmask 523264
  %v1295 = vsel %vm1293, %v1238, 0
  %v1298 = vsel %vm1293, %v1239, 0
  %v1301 = vsel %vm1293, %v1240, 0
  %v1304 = vsel %vm1293, %v1241, 0
  %v1307 = vsel %vm1293, %v1242, 0
  %v1310 = vsel %vm1293, %v1243, 0
  %v1313 = vsel %vm1293, %v1244, 0
  %v1316 = vsel %vm1293, %v1245, 0
  %v1319 = vsel %vm1293, %v1246, 0
  %v1322 = vsel %vm1293, %v1247, 0
  %v1325 = vsel %vm1293, %v1248, 0
  %v1328 = vsel %vm1293, %v1249, 0
  %v1331 = vsel %vm1293, %v1250, 0
  %v1334 = vsel %vm1293, %v1251, 0
  %v1337 = vsel %vm1293, %v1252, 0
  %v1340 = vsel %vm1293, %v1253, 0
  %1342 = vmatprep.subr.bf16.mxu0 0
  %1343 = vmatpush1.bf16.msra.mxu0 %v1285
  %1344 = vmatprep.subr.bf16.mxu0 0
  %1345 = vmatpush1.bf16.msra.mxu0 %v1286
  %1346 = vmatprep.subr.bf16.mxu0 0
  %1347 = vmatpush1.bf16.msra.mxu0 %v1287
  %1348 = vmatprep.subr.bf16.mxu0 0
  %1349 = vmatpush1.bf16.msra.mxu0 %v1288
  %1350 = vmatprep.subr.bf16.mxu0 0
  %1351 = vmatpush1.bf16.msra.mxu0 0
  %1352 = vmatprep.subr.bf16.mxu0 0
  %1353 = vmatpush1.bf16.msra.mxu0 0
  %1354 = vmatprep.subr.bf16.mxu0 0
  %1355 = vmatpush1.bf16.msra.mxu0 0
  %1356 = vmatprep.subr.bf16.mxu0 0
  %1357 = vmatpush1.bf16.msra.mxu0 0
  %1358 = vmatprep.subr.bf16.mxu0 0
  %1359 = vmatpush1.bf16.msra.mxu0 0
  %1360 = vmatprep.subr.bf16.mxu0 0
  %1361 = vmatpush1.bf16.msra.mxu0 0
  %1362 = vmatprep.subr.bf16.mxu0 0
  %1363 = vmatpush1.bf16.msra.mxu0 0
  %1364 = vmatprep.subr.bf16.mxu0 0
  %1365 = vmatpush1.bf16.msra.mxu0 0
  %1366 = vmatprep.subr.bf16.mxu0 0
  %1367 = vmatpush1.bf16.msra.mxu0 0
  %1368 = vmatprep.subr.bf16.mxu0 0
  %1369 = vmatpush1.bf16.msra.mxu0 0
  %1370 = vmatprep.subr.bf16.mxu0 0
  %1371 = vmatpush1.bf16.msra.mxu0 0
  %1372 = vmatprep.subr.bf16.mxu0 0
  %1373 = vmatpush1.bf16.msra.mxu0 0
  %1374 = vmatprep.mubr.bf16.mxu0 0
  %1375 = vmatmul.mubr.bf16.gmra.mrb[0].mxu0 %v1295
  %v1376 = vpop.f32.mrb[0].mxu0
  %v1377 = vadd.f32 %v1267, %v1376
  %v1378 = vpop.f32.mrb[0].mxu0
  %v1379 = vpop.f32.mrb[0].mxu0
  %v1380 = vadd.f32 %v1267, %v1379
  %v1381 = vpop.f32.mrb[0].mxu0
  %1382 = vmatprep.mubr.bf16.mxu0 0
  %1383 = vmatmul.mubr.bf16.gmra.mrb[0].mxu0 %v1298
  %v1384 = vpop.f32.mrb[0].mxu0
  %v1385 = vadd.f32 %v1267, %v1384
  %v1386 = vpop.f32.mrb[0].mxu0
  %v1387 = vpop.f32.mrb[0].mxu0
  %v1388 = vadd.f32 %v1267, %v1387
  %v1389 = vpop.f32.mrb[0].mxu0
  %1390 = vmatprep.mubr.bf16.mxu0 0
  %1391 = vmatmul.mubr.bf16.gmra.mrb[0].mxu0 %v1301
  %v1392 = vpop.f32.mrb[0].mxu0
  %v1393 = vadd.f32 %v1267, %v1392
  %v1394 = vpop.f32.mrb[0].mxu0
  %v1395 = vpop.f32.mrb[0].mxu0
  %v1396 = vadd.f32 %v1267, %v1395
  %v1397 = vpop.f32.mrb[0].mxu0
  %1398 = vmatprep.mubr.bf16.mxu0 0
  %1399 = vmatmul.mubr.bf16.gmra.mrb[0].mxu0 %v1304
  %v1400 = vpop.f32.mrb[0].mxu0
  %v1401 = vadd.f32 %v1267, %v1400
  %v1402 = vpop.f32.mrb[0].mxu0
  %v1403 = vpop.f32.mrb[0].mxu0
  %v1404 = vadd.f32 %v1267, %v1403
  %v1405 = vpop.f32.mrb[0].mxu0
  %1406 = vmatprep.mubr.bf16.mxu0 0
  %1407 = vmatmul.mubr.bf16.gmra.mrb[0].mxu0 %v1307
  %v1408 = vpop.f32.mrb[0].mxu0
  %v1409 = vadd.f32 %v1267, %v1408
  %v1410 = vpop.f32.mrb[0].mxu0
  %v1411 = vpop.f32.mrb[0].mxu0
  %v1412 = vadd.f32 %v1267, %v1411
  %v1413 = vpop.f32.mrb[0].mxu0
  %1414 = vmatprep.mubr.bf16.mxu0 0
  %1415 = vmatmul.mubr.bf16.gmra.mrb[0].mxu0 %v1310
  %v1416 = vpop.f32.mrb[0].mxu0
  %v1417 = vadd.f32 %v1267, %v1416
  %v1418 = vpop.f32.mrb[0].mxu0
  %v1419 = vpop.f32.mrb[0].mxu0
  %v1420 = vadd.f32 %v1267, %v1419
  %v1421 = vpop.f32.mrb[0].mxu0
  %1422 = vmatprep.mubr.bf16.mxu0 0
  %1423 = vmatmul.mubr.bf16.gmra.mrb[0].mxu0 %v1313
  %v1424 = vpop.f32.mrb[0].mxu0
  %v1425 = vadd.f32 %v1267, %v1424
  %v1426 = vpop.f32.mrb[0].mxu0
  %v1427 = vpop.f32.mrb[0].mxu0
  %v1428 = vadd.f32 %v1267, %v1427
  %v1429 = vpop.f32.mrb[0].mxu0
  %1430 = vmatprep.mubr.bf16.mxu0 0
  %1431 = vmatmul.mubr.bf16.gmra.mrb[0].mxu0 %v1316
  %v1432 = vpop.f32.mrb[0].mxu0
  %v1433 = vadd.f32 %v1267, %v1432
  %v1434 = vpop.f32.mrb[0].mxu0
  %v1435 = vpop.f32.mrb[0].mxu0
  %v1436 = vadd.f32 %v1267, %v1435
  %v1437 = vpop.f32.mrb[0].mxu0
  %1438 = vmatprep.mubr.bf16.mxu0 0
  %1439 = vmatmul.mubr.bf16.gmra.mrb[0].mxu0 %v1319
  %v1440 = vpop.f32.mrb[0].mxu0
  %v1441 = vadd.f32 %v1267, %v1440
  %v1442 = vpop.f32.mrb[0].mxu0
  %v1443 = vpop.f32.mrb[0].mxu0
  %v1444 = vadd.f32 %v1267, %v1443
  %v1445 = vpop.f32.mrb[0].mxu0
  %1446 = vmatprep.mubr.bf16.mxu0 0
  %1447 = vmatmul.mubr.bf16.gmra.mrb[0].mxu0 %v1322
  %v1448 = vpop.f32.mrb[0].mxu0
  %v1449 = vadd.f32 %v1267, %v1448
  %v1450 = vpop.f32.mrb[0].mxu0
  %v1451 = vpop.f32.mrb[0].mxu0
  %v1452 = vadd.f32 %v1267, %v1451
  %v1453 = vpop.f32.mrb[0].mxu0
  %1454 = vmatprep.mubr.bf16.mxu0 0
  %1455 = vmatmul.mubr.bf16.gmra.mrb[0].mxu0 %v1325
  %v1456 = vpop.f32.mrb[0].mxu0
  %v1457 = vadd.f32 %v1267, %v1456
  %v1458 = vpop.f32.mrb[0].mxu0
  %v1459 = vpop.f32.mrb[0].mxu0
  %v1460 = vadd.f32 %v1267, %v1459
  %v1461 = vpop.f32.mrb[0].mxu0
  %1462 = vmatprep.mubr.bf16.mxu0 0
  %1463 = vmatmul.mubr.bf16.gmra.mrb[0].mxu0 %v1328
  %v1464 = vpop.f32.mrb[0].mxu0
  %v1465 = vadd.f32 %v1267, %v1464
  %v1466 = vpop.f32.mrb[0].mxu0
  %v1467 = vpop.f32.mrb[0].mxu0
  %v1468 = vadd.f32 %v1267, %v1467
  %v1469 = vpop.f32.mrb[0].mxu0
  %1470 = vmatprep.mubr.bf16.mxu0 0
  %1471 = vmatmul.mubr.bf16.gmra.mrb[0].mxu0 %v1331
  %v1472 = vpop.f32.mrb[0].mxu0
  %v1473 = vadd.f32 %v1267, %v1472
  %v1474 = vpop.f32.mrb[0].mxu0
  %v1475 = vpop.f32.mrb[0].mxu0
  %v1476 = vadd.f32 %v1267, %v1475
  %v1477 = vpop.f32.mrb[0].mxu0
  %1478 = vmatprep.mubr.bf16.mxu0 0
  %1479 = vmatmul.mubr.bf16.gmra.mrb[0].mxu0 %v1334
  %v1480 = vpop.f32.mrb[0].mxu0
  %v1481 = vadd.f32 %v1267, %v1480
  %v1482 = vpop.f32.mrb[0].mxu0
  %v1483 = vpop.f32.mrb[0].mxu0
  %v1484 = vadd.f32 %v1267, %v1483
  %v1485 = vpop.f32.mrb[0].mxu0
  %1486 = vmatprep.mubr.bf16.mxu0 0
  %1487 = vmatmul.mubr.bf16.gmra.mrb[0].mxu0 %v1337
  %v1488 = vpop.f32.mrb[0].mxu0
  %v1489 = vadd.f32 %v1267, %v1488
  %v1490 = vpop.f32.mrb[0].mxu0
  %v1491 = vpop.f32.mrb[0].mxu0
  %v1492 = vadd.f32 %v1267, %v1491
  %v1493 = vpop.f32.mrb[0].mxu0
  %1494 = vmatprep.mubr.bf16.mxu0 0
  %1495 = vmatmul.mubr.bf16.gmra.mrb[0].mxu0 %v1340
  %v1496 = vpop.f32.mrb[0].mxu0
  %v1497 = vadd.f32 %v1267, %v1496
  %v1498 = vpop.f32.mrb[0].mxu0
  %v1499 = vpop.f32.mrb[0].mxu0
  %v1500 = vadd.f32 %v1267, %v1499
  %v1501 = vpop.f32.mrb[0].mxu0
  %1502 = vdwg.mxu0
  %v1503 = vmax.f32 %v1377, 0.0
  %v1504 = vmax.f32 %v1380, 0.0
  %v1505 = vmax.f32 %v1385, 0.0
  %v1506 = vmax.f32 %v1388, 0.0
  %v1507 = vmax.f32 %v1393, 0.0
  %v1508 = vmax.f32 %v1396, 0.0
  %v1509 = vmax.f32 %v1401, 0.0
  %v1510 = vmax.f32 %v1404, 0.0
  %v1511 = vmax.f32 %v1409, 0.0
  %v1512 = vmax.f32 %v1412, 0.0
  %v1513 = vmax.f32 %v1417, 0.0
  %v1514 = vmax.f32 %v1420, 0.0
  %v1515 = vmax.f32 %v1425, 0.0
  %v1516 = vmax.f32 %v1428, 0.0
  %v1517 = vmax.f32 %v1433, 0.0
  %v1518 = vmax.f32 %v1436, 0.0
  %v1519 = vmax.f32 %v1441, 0.0
  %v1520 = vmax.f32 %v1444, 0.0
  %v1521 = vmax.f32 %v1449, 0.0
  %v1522 = vmax.f32 %v1452, 0.0
  %v1523 = vmax.f32 %v1457, 0.0
  %v1524 = vmax.f32 %v1460, 0.0
  %v1525 = vmax.f32 %v1465, 0.0
  %v1526 = vmax.f32 %v1468, 0.0
  %v1527 = vmax.f32 %v1473, 0.0
  %v1528 = vmax.f32 %v1476, 0.0
  %v1529 = vmax.f32 %v1481, 0.0
  %v1530 = vmax.f32 %v1484, 0.0
  %v1531 = vmax.f32 %v1489, 0.0
  %v1532 = vmax.f32 %v1492, 0.0
  %v1533 = vmax.f32 %v1497, 0.0
  %v1534 = vmax.f32 %v1500, 0.0
  %v1535 = vpack.c.bf16 %v1504, %v1503
  %v1536 = vpack.c.bf16 %v1506, %v1505
  %v1537 = vpack.c.bf16 %v1508, %v1507
  %v1538 = vpack.c.bf16 %v1510, %v1509
  %v1539 = vpack.c.bf16 %v1512, %v1511
  %v1540 = vpack.c.bf16 %v1514, %v1513
  %v1541 = vpack.c.bf16 %v1516, %v1515
  %v1542 = vpack.c.bf16 %v1518, %v1517
  %v1543 = vpack.c.bf16 %v1520, %v1519
  %v1544 = vpack.c.bf16 %v1522, %v1521
  %v1545 = vpack.c.bf16 %v1524, %v1523
  %v1546 = vpack.c.bf16 %v1526, %v1525
  %v1547 = vpack.c.bf16 %v1528, %v1527
  %v1548 = vpack.c.bf16 %v1530, %v1529
  %v1549 = vpack.c.bf16 %v1532, %v1531
  %v1550 = vpack.c.bf16 %v1534, %v1533
  %v1551 = vld [vmem:[%s11] sm:$0xf]
  %v1552 = vld [vmem:[%s11 + $0x4] sm:$0xf]
  %v1553 = vld [vmem:[%s11 + $0x8] sm:$0xf]
  %v1554 = vld [vmem:[%s11 + $0xc] sm:$0xf]
  %v1555 = vld [vmem:[%s12] sm:$0x1]
  %v1557 = vlaneseq
  %v1558 = vshrl.u32 %v1557, 7
  %v1559 = vsub.s32 0, %v1558
  %v1560 = vrot.slane %v1555, %v1559
  %v1566 = vunpack.c.l.b16 %v1551
  %v1567 = vunpack.c.l.b16 %v1552
  %v1568 = vunpack.c.l.b16 %v1553
  %v1569 = vunpack.c.l.b16 %v1554
  %v1570 = vpack.c.b16 %v1567, %v1566
  %v1571 = vpack.c.b16 %v1569, %v1568
  %vm1574 = vcmask 261120
  %v1576 = vsel %vm1574, %v1535, 0
  %v1579 = vsel %vm1574, %v1536, 0
  %v1582 = vsel %vm1574, %v1537, 0
  %v1585 = vsel %vm1574, %v1538, 0
  %v1588 = vsel %vm1574, %v1539, 0
  %v1591 = vsel %vm1574, %v1540, 0
  %v1594 = vsel %vm1574, %v1541, 0
  %v1597 = vsel %vm1574, %v1542, 0
  %v1600 = vsel %vm1574, %v1543, 0
  %v1603 = vsel %vm1574, %v1544, 0
  %v1606 = vsel %vm1574, %v1545, 0
  %v1609 = vsel %vm1574, %v1546, 0
  %v1612 = vsel %vm1574, %v1547, 0
  %v1615 = vsel %vm1574, %v1548, 0
  %v1618 = vsel %vm1574, %v1549, 0
  %v1621 = vsel %vm1574, %v1550, 0
  %1623 = vmatprep.subr.bf16.mxu0 0
  %1624 = vmatpush1.bf16.msra.mxu0 %v1570
  %1625 = vmatprep.subr.bf16.mxu0 0
  %1626 = vmatpush1.bf16.msra.mxu0 %v1571
  %1627 = vmatprep.subr.bf16.mxu0 0
  %1628 = vmatpush1.bf16.msra.mxu0 0
  %1629 = vmatprep.subr.bf16.mxu0 0
  %1630 = vmatpush1.bf16.msra.mxu0 0
  %1631 = vmatprep.subr.bf16.mxu0 0
  %1632 = vmatpush1.bf16.msra.mxu0 0
  %1633 = vmatprep.subr.bf16.mxu0 0
  %1634 = vmatpush1.bf16.msra.mxu0 0
  %1635 = vmatprep.subr.bf16.mxu0 0
  %1636 = vmatpush1.bf16.msra.mxu0 0
  %1637 = vmatprep.subr.bf16.mxu0 0
  %1638 = vmatpush1.bf16.msra.mxu0 0
  %1639 = vmatprep.subr.bf16.mxu0 0
  %1640 = vmatpush1.bf16.msra.mxu0 0
  %1641 = vmatprep.subr.bf16.mxu0 0
  %1642 = vmatpush1.bf16.msra.mxu0 0
  %1643 = vmatprep.subr.bf16.mxu0 0
  %1644 = vmatpush1.bf16.msra.mxu0 0
  %1645 = vmatprep.subr.bf16.mxu0 0
  %1646 = vmatpush1.bf16.msra.mxu0 0
  %1647 = vmatprep.subr.bf16.mxu0 0
  %1648 = vmatpush1.bf16.msra.mxu0 0
  %1649 = vmatprep.subr.bf16.mxu0 0
  %1650 = vmatpush1.bf16.msra.mxu0 0
  %1651 = vmatprep.subr.bf16.mxu0 0
  %1652 = vmatpush1.bf16.msra.mxu0 0
  %1653 = vmatprep.subr.bf16.mxu0 0
  %1654 = vmatpush1.bf16.msra.mxu0 0
  %1655 = vmatprep.mubr.bf16.mxu0 0
  %1656 = vmatmul.mubr.bf16.gmra.mrb[0].mxu0 %v1576
  %v1657 = vpop.f32.mrb[0].mxu0
  %v1658 = vadd.f32 %v1560, %v1657
  %v1659 = vpop.f32.mrb[0].mxu0
  %v1660 = vpop.f32.mrb[0].mxu0
  %v1661 = vadd.f32 %v1560, %v1660
  %v1662 = vpop.f32.mrb[0].mxu0
  %1663 = vmatprep.mubr.bf16.mxu0 0
  %1664 = vmatmul.mubr.bf16.gmra.mrb[0].mxu0 %v1579
  %v1665 = vpop.f32.mrb[0].mxu0
  %v1666 = vadd.f32 %v1560, %v1665
  %v1667 = vpop.f32.mrb[0].mxu0
  %v1668 = vpop.f32.mrb[0].mxu0
  %v1669 = vadd.f32 %v1560, %v1668
  %v1670 = vpop.f32.mrb[0].mxu0
  %1671 = vmatprep.mubr.bf16.mxu0 0
  %1672 = vmatmul.mubr.bf16.gmra.mrb[0].mxu0 %v1582
  %v1673 = vpop.f32.mrb[0].mxu0
  %v1674 = vadd.f32 %v1560, %v1673
  %v1675 = vpop.f32.mrb[0].mxu0
  %v1676 = vpop.f32.mrb[0].mxu0
  %v1677 = vadd.f32 %v1560, %v1676
  %v1678 = vpop.f32.mrb[0].mxu0
  %1679 = vmatprep.mubr.bf16.mxu0 0
  %1680 = vmatmul.mubr.bf16.gmra.mrb[0].mxu0 %v1585
  %v1681 = vpop.f32.mrb[0].mxu0
  %v1682 = vadd.f32 %v1560, %v1681
  %v1683 = vpop.f32.mrb[0].mxu0
  %v1684 = vpop.f32.mrb[0].mxu0
  %v1685 = vadd.f32 %v1560, %v1684
  %v1686 = vpop.f32.mrb[0].mxu0
  %1687 = vmatprep.mubr.bf16.mxu0 0
  %1688 = vmatmul.mubr.bf16.gmra.mrb[0].mxu0 %v1588
  %v1689 = vpop.f32.mrb[0].mxu0
  %v1690 = vadd.f32 %v1560, %v1689
  %v1691 = vpop.f32.mrb[0].mxu0
  %v1692 = vpop.f32.mrb[0].mxu0
  %v1693 = vadd.f32 %v1560, %v1692
  %v1694 = vpop.f32.mrb[0].mxu0
  %1695 = vmatprep.mubr.bf16.mxu0 0
  %1696 = vmatmul.mubr.bf16.gmra.mrb[0].mxu0 %v1591
  %v1697 = vpop.f32.mrb[0].mxu0
  %v1698 = vadd.f32 %v1560, %v1697
  %v1699 = vpop.f32.mrb[0].mxu0
  %v1700 = vpop.f32.mrb[0].mxu0
  %v1701 = vadd.f32 %v1560, %v1700
  %v1702 = vpop.f32.mrb[0].mxu0
  %1703 = vmatprep.mubr.bf16.mxu0 0
  %1704 = vmatmul.mubr.bf16.gmra.mrb[0].mxu0 %v1594
  %v1705 = vpop.f32.mrb[0].mxu0
  %v1706 = vadd.f32 %v1560, %v1705
  %v1707 = vpop.f32.mrb[0].mxu0
  %v1708 = vpop.f32.mrb[0].mxu0
  %v1709 = vadd.f32 %v1560, %v1708
  %v1710 = vpop.f32.mrb[0].mxu0
  %1711 = vmatprep.mubr.bf16.mxu0 0
  %1712 = vmatmul.mubr.bf16.gmra.mrb[0].mxu0 %v1597
  %v1713 = vpop.f32.mrb[0].mxu0
  %v1714 = vadd.f32 %v1560, %v1713
  %v1715 = vpop.f32.mrb[0].mxu0
  %v1716 = vpop.f32.mrb[0].mxu0
  %v1717 = vadd.f32 %v1560, %v1716
  %v1718 = vpop.f32.mrb[0].mxu0
  %1719 = vmatprep.mubr.bf16.mxu0 0
  %1720 = vmatmul.mubr.bf16.gmra.mrb[0].mxu0 %v1600
  %v1721 = vpop.f32.mrb[0].mxu0
  %v1722 = vadd.f32 %v1560, %v1721
  %v1723 = vpop.f32.mrb[0].mxu0
  %v1724 = vpop.f32.mrb[0].mxu0
  %v1725 = vadd.f32 %v1560, %v1724
  %v1726 = vpop.f32.mrb[0].mxu0
  %1727 = vmatprep.mubr.bf16.mxu0 0
  %1728 = vmatmul.mubr.bf16.gmra.mrb[0].mxu0 %v1603
  %v1729 = vpop.f32.mrb[0].mxu0
  %v1730 = vadd.f32 %v1560, %v1729
  %v1731 = vpop.f32.mrb[0].mxu0
  %v1732 = vpop.f32.mrb[0].mxu0
  %v1733 = vadd.f32 %v1560, %v1732
  %v1734 = vpop.f32.mrb[0].mxu0
  %1735 = vmatprep.mubr.bf16.mxu0 0
  %1736 = vmatmul.mubr.bf16.gmra.mrb[0].mxu0 %v1606
  %v1737 = vpop.f32.mrb[0].mxu0
  %v1738 = vadd.f32 %v1560, %v1737
  %v1739 = vpop.f32.mrb[0].mxu0
  %v1740 = vpop.f32.mrb[0].mxu0
  %v1741 = vadd.f32 %v1560, %v1740
  %v1742 = vpop.f32.mrb[0].mxu0
  %1743 = vmatprep.mubr.bf16.mxu0 0
  %1744 = vmatmul.mubr.bf16.gmra.mrb[0].mxu0 %v1609
  %v1745 = vpop.f32.mrb[0].mxu0
  %v1746 = vadd.f32 %v1560, %v1745
  %v1747 = vpop.f32.mrb[0].mxu0
  %v1748 = vpop.f32.mrb[0].mxu0
  %v1749 = vadd.f32 %v1560, %v1748
  %v1750 = vpop.f32.mrb[0].mxu0
  %1751 = vmatprep.mubr.bf16.mxu0 0
  %1752 = vmatmul.mubr.bf16.gmra.mrb[0].mxu0 %v1612
  %v1753 = vpop.f32.mrb[0].mxu0
  %v1754 = vadd.f32 %v1560, %v1753
  %v1755 = vpop.f32.mrb[0].mxu0
  %v1756 = vpop.f32.mrb[0].mxu0
  %v1757 = vadd.f32 %v1560, %v1756
  %v1758 = vpop.f32.mrb[0].mxu0
  %1759 = vmatprep.mubr.bf16.mxu0 0
  %1760 = vmatmul.mubr.bf16.gmra.mrb[0].mxu0 %v1615
  %v1761 = vpop.f32.mrb[0].mxu0
  %v1762 = vadd.f32 %v1560, %v1761
  %v1763 = vpop.f32.mrb[0].mxu0
  %v1764 = vpop.f32.mrb[0].mxu0
  %v1765 = vadd.f32 %v1560, %v1764
  %v1766 = vpop.f32.mrb[0].mxu0
  %1767 = vmatprep.mubr.bf16.mxu0 0
  %1768 = vmatmul.mubr.bf16.gmra.mrb[0].mxu0 %v1618
  %v1769 = vpop.f32.mrb[0].mxu0
  %v1770 = vadd.f32 %v1560, %v1769
  %v1771 = vpop.f32.mrb[0].mxu0
  %v1772 = vpop.f32.mrb[0].mxu0
  %v1773 = vadd.f32 %v1560, %v1772
  %v1774 = vpop.f32.mrb[0].mxu0
  %1775 = vmatprep.mubr.bf16.mxu0 0
  %1776 = vmatmul.mubr.bf16.gmra.mrb[0].mxu0 %v1621
  %v1777 = vpop.f32.mrb[0].mxu0
  %v1778 = vadd.f32 %v1560, %v1777
  %v1779 = vpop.f32.mrb[0].mxu0
  %v1780 = vpop.f32.mrb[0].mxu0
  %v1781 = vadd.f32 %v1560, %v1780
  %v1782 = vpop.f32.mrb[0].mxu0
  %1783 = vdwg.mxu0
  %vm1784 = vcmask 105472
  %1785 = vst.msk [vmem:[%s13] sm:$0xff] %vm1784, %v1658
  %1786 = vst.msk [vmem:[%s13 + $0x8] sm:$0xff] %vm1784, %v1661
  %1787 = vst.msk [vmem:[%s13 + $0x10] sm:$0xff] %vm1784, %v1666
  %1788 = vst.msk [vmem:[%s13 + $0x18] sm:$0xff] %vm1784, %v1669
  %1789 = vst.msk [vmem:[%s13 + $0x20] sm:$0xff] %vm1784, %v1674
  %1790 = vst.msk [vmem:[%s13 + $0x28] sm:$0xff] %vm1784, %v1677
  %1791 = vst.msk [vmem:[%s13 + $0x30] sm:$0xff] %vm1784, %v1682
  %1792 = vst.msk [vmem:[%s13 + $0x38] sm:$0xff] %vm1784, %v1685
  %1793 = vst.msk [vmem:[%s13 + $0x40] sm:$0xff] %vm1784, %v1690
  %1794 = vst.msk [vmem:[%s13 + $0x48] sm:$0xff] %vm1784, %v1693
  %1795 = vst.msk [vmem:[%s13 + $0x50] sm:$0xff] %vm1784, %v1698
  %1796 = vst.msk [vmem:[%s13 + $0x58] sm:$0xff] %vm1784, %v1701
  %1797 = vst.msk [vmem:[%s13 + $0x60] sm:$0xff] %vm1784, %v1706
  %1798 = vst.msk [vmem:[%s13 + $0x68] sm:$0xff] %vm1784, %v1709
  %1799 = vst.msk [vmem:[%s13 + $0x70] sm:$0xff] %vm1784, %v1714
  %1800 = vst.msk [vmem:[%s13 + $0x78] sm:$0xff] %vm1784, %v1717
  %1801 = vst.msk [vmem:[%s13 + $0x80] sm:$0xff] %vm1784, %v1722
  %1802 = vst.msk [vmem:[%s13 + $0x88] sm:$0xff] %vm1784, %v1725
  %1803 = vst.msk [vmem:[%s13 + $0x90] sm:$0xff] %vm1784, %v1730
  %1804 = vst.msk [vmem:[%s13 + $0x98] sm:$0xff] %vm1784, %v1733
  %1805 = vst.msk [vmem:[%s13 + $0xa0] sm:$0xff] %vm1784, %v1738
  %1806 = vst.msk [vmem:[%s13 + $0xa8] sm:$0xff] %vm1784, %v1741
  %1807 = vst.msk [vmem:[%s13 + $0xb0] sm:$0xff] %vm1784, %v1746
  %1808 = vst.msk [vmem:[%s13 + $0xb8] sm:$0xff] %vm1784, %v1749
  %1809 = vst.msk [vmem:[%s13 + $0xc0] sm:$0xff] %vm1784, %v1754
  %1810 = vst.msk [vmem:[%s13 + $0xc8] sm:$0xff] %vm1784, %v1757
  %1811 = vst.msk [vmem:[%s13 + $0xd0] sm:$0xff] %vm1784, %v1762
  %1812 = vst.msk [vmem:[%s13 + $0xd8] sm:$0xff] %vm1784, %v1765
  %1813 = vst.msk [vmem:[%s13 + $0xe0] sm:$0xff] %vm1784, %v1770
  %1814 = vst.msk [vmem:[%s13 + $0xe8] sm:$0xff] %vm1784, %v1773
  %1815 = vst.msk [vmem:[%s13 + $0xf0] sm:$0xff] %vm1784, %v1778
  %1816 = vst.msk [vmem:[%s13 + $0xf8] sm:$0xff] %vm1784, %v1781
  // Predicated region
  $region54: #{_lambda_.1} parent=0 // pred_check
    _
  $region55: #{_lambda_.1} parent=0 // pred_check_branch
    %1818 = sbr.rel (0) target = $region57
  $region56: #{_lambda_.1} parent=0 // pred_region
    _
  $region57: #{_lambda_.1} parent=0 // pred_fallthru
    _
  // Predicated region
  $region58: #{_lambda_.1} parent=0 // pred_check
    _
  $region59: #{_lambda_.1} parent=0 // pred_check_branch
    %1820 = sbr.rel (0) target = $region61
  $region60: #{_lambda_.1} parent=0 // pred_region
    _
  $region61: #{_lambda_.1} parent=0 // pred_fallthru
    _

</llo_original>
